<compile_context>
chip_gen: v5e
topology: v5e:2x2
jax: 0.10.0
libtpu: 0.0.40
codegen_flags: <defaults>
</compile_context>

<pallas_src>
import functools

import jax
import jax.numpy as jnp
from jax import lax
from jax.experimental import pallas as pl
from jax.experimental.pallas import tpu as pltpu

# --- small, lane-friendly config (consistent with LlamaConfig fields) ---
HIDDEN = 256           # config.hidden_size
NUM_HEADS = 2          # config.num_attention_heads
NUM_KV_HEADS = 1       # config.num_key_value_heads  (GQA group = 2)
HEAD_DIM = HIDDEN // NUM_HEADS        # 128 -> per-head slices are full lane groups
Q_SIZE = NUM_HEADS * HEAD_DIM         # 256
KV_SIZE = NUM_KV_HEADS * HEAD_DIM     # 128
INTERMEDIATE = 512     # config.intermediate_size
SEQ = 8                # number of prompt tokens
RMS_EPS = 1e-6         # config.rms_norm_eps
ROPE_THETA = 10000.0   # config.rope_theta
DTYPE = jnp.float32    # activation dtype at the HBM boundary


# ----------------------- fused decoder-layer kernel --------------------------
def _decoder_layer_kernel(*refs, has_residual):
    f32 = jnp.float32
    bf16 = jnp.bfloat16
    if has_residual:
        (x_ref, res_ref, w_in_ln_ref, w_qkv_ref, cos_ref, sin_ref,
         w_o_ref, w_post_ln_ref, w_gate_up_ref, w_down_ref,
         out_ref, res_out_ref) = refs
    else:
        (x_ref, w_in_ln_ref, w_qkv_ref, cos_ref, sin_ref,
         w_o_ref, w_post_ln_ref, w_gate_up_ref, w_down_ref,
         out_ref, res_out_ref) = refs
        res_ref = None

    def rmsnorm(v, w):
        var = jnp.mean(v * v, axis=-1, keepdims=True)
        return v * lax.rsqrt(var + RMS_EPS) * w

    x = x_ref[...].astype(f32)

    # ---- input layernorm (fused residual add) ----
    s0 = x if res_ref is None else x + res_ref[...].astype(f32)
    h = rmsnorm(s0, w_in_ln_ref[...].astype(f32))

    # ---- qkv projection: bf16 MXU operands, f32 accumulate ----
    # (1/sqrt(head_dim) already folded into the q columns of w_qkv at init.)
    qkv = jnp.dot(h.astype(bf16), w_qkv_ref[...], preferred_element_type=f32)
    q = qkv[:, :Q_SIZE]                          # (S, 256), lane-aligned
    k = qkv[:, Q_SIZE:Q_SIZE + KV_SIZE]          # (S, 128)
    v = qkv[:, Q_SIZE + KV_SIZE:]                # (S, 128)

    # ---- RoPE (neox): rotate-half via pltpu.roll (XLU), sign folded in sin ----
    cos = cos_ref[...]                           # (S, HEAD_DIM)
    sin = sin_ref[...]                           # (S, HEAD_DIM) = concat(-sin, +sin)

    def rope(t):                                 # t: (S, HEAD_DIM) lane-dense slab
        return t * cos + pltpu.roll(t, shift=HEAD_DIM // 2, axis=1) * sin

    q_heads = [rope(q[:, hh * HEAD_DIM:(hh + 1) * HEAD_DIM])
               for hh in range(NUM_HEADS)]

    # ---- causal GQA attention: one score/PV matmul per KV head, with the
    # whole query group stacked along the sublane (row) axis ----
    seq = x.shape[0]
    group = NUM_HEADS // NUM_KV_HEADS
    row = lax.broadcasted_iota(jnp.int32, (group * seq, seq), 0)
    col = lax.broadcasted_iota(jnp.int32, (group * seq, seq), 1)
    causal = col <= (row % seq)

    head_outs = []
    for kvh in range(NUM_KV_HEADS):              # unrolled at trace time
        kh = rope(k[:, kvh * HEAD_DIM:(kvh + 1) * HEAD_DIM]).astype(bf16)
        vh = v[:, kvh * HEAD_DIM:(kvh + 1) * HEAD_DIM].astype(bf16)
        qg = jnp.concatenate(
            [q_heads[kvh * group + g] for g in range(group)], axis=0
        ).astype(bf16)                           # (group*S, HEAD_DIM)
        s = lax.dot_general(qg, kh, (((1,), (1,)), ((), ())),
                            preferred_element_type=f32)        # (group*S, S)
        s = jnp.where(causal, s, -1e30)
        m = jnp.max(s, axis=-1, keepdims=True)
        p = jnp.exp(s - m)
        p = p / jnp.sum(p, axis=-1, keepdims=True)             # exact denom
        pv = jnp.dot(p.astype(bf16), vh, preferred_element_type=f32)
        for g in range(group):
            head_outs.append(pv[g * seq:(g + 1) * seq, :])
    # head pieces are full 128-lane slabs -> concat is a clean vreg placement
    attn = jnp.concatenate(head_outs, axis=-1)                  # (S, Q_SIZE)

    # ---- output projection ----
    attn_o = jnp.dot(attn.astype(bf16), w_o_ref[...], preferred_element_type=f32)

    # ---- post-attention layernorm (fused residual add) ----
    s1 = attn_o + s0
    res_out_ref[...] = s1.astype(res_out_ref.dtype)
    h2 = rmsnorm(s1, w_post_ln_ref[...].astype(f32))

    # ---- MLP: gate_up -> SiluAndMul -> down ----
    gu = jnp.dot(h2.astype(bf16), w_gate_up_ref[...], preferred_element_type=f32)
    gate = gu[:, :INTERMEDIATE]
    up = gu[:, INTERMEDIATE:]
    sig = pl.reciprocal(1.0 + jnp.exp(-gate), approx=True)      # sigmoid (EUP)
    act = gate * sig * up
    out_ref[...] = jnp.dot(act.astype(bf16), w_down_ref[...],
                           preferred_element_type=f32).astype(out_ref.dtype)


# ------------------------------ RoPE tables ----------------------------------
def _rope_tables(positions):
    # (S, HEAD_DIM) tables only -- no per-head tiling.  The rotate-half sign is
    # folded into the sin table: sin_signed = concat(-sin, +sin).
    half = HEAD_DIM // 2
    inv_freq = 1.0 / (ROPE_THETA ** (jnp.arange(half, dtype=jnp.float32) / half))
    ang = positions.astype(jnp.float32)[:, None] * inv_freq[None, :]   # (S, half)
    cos = jnp.cos(ang)
    sin = jnp.sin(ang)
    cos_full = jnp.concatenate([cos, cos], axis=-1)
    sin_signed = jnp.concatenate([-sin, sin], axis=-1)
    return cos_full, sin_signed


# ------------------------------ parameters -----------------------------------
def init_params(key):
    """Natural f32 weights (used by the pure-JAX reference)."""
    ks = jax.random.split(key, 4)
    std = 0.02
    qkv_out = (NUM_HEADS + 2 * NUM_KV_HEADS) * HEAD_DIM
    return {
        "w_qkv": (std * jax.random.normal(ks[0], (HIDDEN, qkv_out))).astype(jnp.float32),
        "w_o": (std * jax.random.normal(ks[1], (Q_SIZE, HIDDEN))).astype(jnp.float32),
        "w_gate_up": (std * jax.random.normal(ks[2], (HIDDEN, 2 * INTERMEDIATE))).astype(jnp.float32),
        "w_down": (std * jax.random.normal(ks[3], (INTERMEDIATE, HIDDEN))).astype(jnp.float32),
        "w_input_ln": jnp.ones((1, HIDDEN), jnp.float32),
        "w_post_ln": jnp.ones((1, HIDDEN), jnp.float32),
    }


def prepare_kernel_params(params):
    """One-time prep: fold 1/sqrt(head_dim) into the q columns of w_qkv and
    cast projection weights to bf16 (MXU operands); LN weights stay f32."""
    scale = HEAD_DIM ** -0.5
    w_qkv = params["w_qkv"].at[:, :Q_SIZE].multiply(scale)
    return {
        "w_qkv": w_qkv.astype(jnp.bfloat16),
        "w_o": params["w_o"].astype(jnp.bfloat16),
        "w_gate_up": params["w_gate_up"].astype(jnp.bfloat16),
        "w_down": params["w_down"].astype(jnp.bfloat16),
        "w_input_ln": params["w_input_ln"].astype(jnp.float32),
        "w_post_ln": params["w_post_ln"].astype(jnp.float32),
    }


# --------------------------- decoder layer forward ----------------------------
@functools.partial(jax.jit, static_argnames=("has_residual",))
def _fused_forward(positions, hidden_states, residual, kparams, *, has_residual):
    cos_t, sin_t = _rope_tables(positions)
    seq, hid = hidden_states.shape
    kernel = functools.partial(_decoder_layer_kernel, has_residual=has_residual)
    args = [hidden_states]
    if has_residual:
        args.append(residual)
    args += [kparams["w_input_ln"], kparams["w_qkv"], cos_t, sin_t,
             kparams["w_o"], kparams["w_post_ln"],
             kparams["w_gate_up"], kparams["w_down"]]
    out, new_residual = pl.pallas_call(
        kernel,
        out_shape=(jax.ShapeDtypeStruct((seq, hid), hidden_states.dtype),
                   jax.ShapeDtypeStruct((seq, hid), hidden_states.dtype)),
        compiler_params=pltpu.CompilerParams(vmem_limit_bytes=32 * 1024 * 1024),
    )(*args)
    return out, new_residual


def llama_decoder_layer(positions, hidden_states, residual, kparams):
    # residual=None (first layer): residual := x, h := rmsnorm(x).  Handled by
    # a specialized kernel variant (no zero-residual DMA).
    if residual is None:
        return _fused_forward(positions, hidden_states, None, kparams,
                              has_residual=False)
    return _fused_forward(positions, hidden_states, residual, kparams,
                          has_residual=True)


# --------------------------- pure-JAX reference -------------------------------
def _reference_layer(positions, x, residual, params):
    if residual is None:
        residual = jnp.zeros_like(x)

    def rms(v, w):
        var = jnp.mean(v * v, axis=-1, keepdims=True)
        return v * lax.rsqrt(var + RMS_EPS) * w

    s0 = x + residual
    h = rms(s0, params["w_input_ln"])
    qkv = h @ params["w_qkv"]
    q = qkv[:, :Q_SIZE]
    k = qkv[:, Q_SIZE:Q_SIZE + KV_SIZE]
    v = qkv[:, Q_SIZE + KV_SIZE:]

    half = HEAD_DIM // 2
    inv_freq = 1.0 / (ROPE_THETA ** (jnp.arange(half, dtype=jnp.float32) / half))
    ang = positions.astype(jnp.float32)[:, None] * inv_freq[None, :]
    cos, sin = jnp.cos(ang), jnp.sin(ang)

    def rope(t, nh):
        t = t.reshape(-1, nh, HEAD_DIM)
        t1, t2 = t[..., :half], t[..., half:]
        o = jnp.concatenate([t1 * cos[:, None, :] - t2 * sin[:, None, :],
                             t2 * cos[:, None, :] + t1 * sin[:, None, :]], axis=-1)
        return o.reshape(-1, nh * HEAD_DIM)

    q = rope(q, NUM_HEADS)
    k = rope(k, NUM_KV_HEADS)
    group = NUM_HEADS // NUM_KV_HEADS
    qh = q.reshape(-1, NUM_HEADS, HEAD_DIM).transpose(1, 0, 2)
    kh = jnp.repeat(k.reshape(-1, NUM_KV_HEADS, HEAD_DIM).transpose(1, 0, 2), group, axis=0)
    vh = jnp.repeat(v.reshape(-1, NUM_KV_HEADS, HEAD_DIM).transpose(1, 0, 2), group, axis=0)
    sc = jnp.einsum('hqd,hkd->hqk', qh, kh) * HEAD_DIM ** -0.5
    seq = x.shape[0]
    mask = jnp.tril(jnp.ones((seq, seq), dtype=bool))
    sc = jnp.where(mask, sc, -1e30)
    p = jax.nn.softmax(sc, axis=-1)
    ao = jnp.einsum('hqk,hkd->hqd', p, vh).transpose(1, 0, 2).reshape(seq, -1)
    ao = ao @ params["w_o"]
    s1 = ao + s0
    h2 = rms(s1, params["w_post_ln"])
    gu = h2 @ params["w_gate_up"]
    gate, up = gu[:, :INTERMEDIATE], gu[:, INTERMEDIATE:]
    mlp = (jax.nn.silu(gate) * up) @ params["w_down"]
    return mlp, s1


if __name__ == "__main__":
    key = jax.random.PRNGKey(0)
    pkey, xkey = jax.random.split(key)
    params = init_params(pkey)               # natural f32 weights (reference)
    kparams = prepare_kernel_params(params)  # bf16 MXU weights, scale folded

    hidden_states = jax.random.normal(xkey, (SEQ, HIDDEN), dtype=DTYPE)
    positions = jnp.arange(SEQ, dtype=jnp.int32)

    # first layer (residual=None path -> specialized no-residual kernel)
    out, residual = llama_decoder_layer(positions, hidden_states, None, kparams)
    jax.block_until_ready((out, residual))
    assert out.shape == (SEQ, HIDDEN) and residual.shape == (SEQ, HIDDEN)

    ref_out, ref_res = _reference_layer(positions, hidden_states, None, params)
    assert jnp.allclose(out, ref_out, rtol=5e-2, atol=5e-2), \
        float(jnp.max(jnp.abs(out - ref_out)))
    assert jnp.allclose(residual, ref_res, rtol=5e-2, atol=5e-2), \
        float(jnp.max(jnp.abs(residual - ref_res)))

    # second call exercising the residual-carrying path (layers > 0)
    out2, residual2 = llama_decoder_layer(positions, out, residual, kparams)
    jax.block_until_ready((out2, residual2))
    assert out2.shape == (SEQ, HIDDEN) and residual2.shape == (SEQ, HIDDEN)

    ref_out2, ref_res2 = _reference_layer(positions, out, residual, params)
    assert jnp.allclose(out2, ref_out2, rtol=5e-2, atol=5e-2), \
        float(jnp.max(jnp.abs(out2 - ref_out2)))
    assert jnp.allclose(residual2, ref_res2, rtol=5e-2, atol=5e-2), \
        float(jnp.max(jnp.abs(residual2 - ref_res2)))

    print("KERNEL_OK")
</pallas_src>

<mosaic_0001>
module attributes {stable_mosaic.version = 11 : i64} {
  func.func @_decoder_layer_kernel(%arg0: memref<8x256xf32, #tpu.memory_space<vmem>>, %arg1: memref<1x256xf32, #tpu.memory_space<vmem>>, %arg2: memref<256x512xbf16, #tpu.memory_space<vmem>>, %arg3: memref<8x128xf32, #tpu.memory_space<vmem>>, %arg4: memref<8x128xf32, #tpu.memory_space<vmem>>, %arg5: memref<256x256xbf16, #tpu.memory_space<vmem>>, %arg6: memref<1x256xf32, #tpu.memory_space<vmem>>, %arg7: memref<256x1024xbf16, #tpu.memory_space<vmem>>, %arg8: memref<512x256xbf16, #tpu.memory_space<vmem>>, %arg9: memref<8x256xf32, #tpu.memory_space<vmem>>, %arg10: memref<8x256xf32, #tpu.memory_space<vmem>>) attributes {dimension_semantics = [], scalar_prefetch = 0 : i64, scratch_operands = 0 : i64, tpu.core_type = #tpu.core_type<tc>} {
    %c0 = arith.constant 0 : index
    %c0_0 = arith.constant 0 : index
    %0 = vector.load %arg0[%c0, %c0_0] : memref<8x256xf32, #tpu.memory_space<vmem>>, vector<8x256xf32>
    %c0_1 = arith.constant 0 : index
    %c0_2 = arith.constant 0 : index
    %1 = vector.load %arg1[%c0_1, %c0_2] : memref<1x256xf32, #tpu.memory_space<vmem>>, vector<1x256xf32>
    %2 = arith.mulf %0, %0 : vector<8x256xf32>
    %cst = arith.constant dense<0.000000e+00> : vector<8xf32>
    %3 = vector.multi_reduction <add>, %2, %cst [1] : vector<8x256xf32> to vector<8xf32>
    %4 = vector.shape_cast %3 : vector<8xf32> to vector<8x1xf32>
    %cst_3 = arith.constant 2.560000e+02 : f32
    %5 = vector.broadcast %cst_3 : f32 to vector<8x1xf32>
    %6 = arith.divf %4, %5 : vector<8x1xf32>
    %cst_4 = arith.constant 9.99999997E-7 : f32
    %7 = vector.broadcast %cst_4 : f32 to vector<8x1xf32>
    %8 = arith.addf %6, %7 : vector<8x1xf32>
    %9 = math.rsqrt %8 : vector<8x1xf32>
    %10 = vector.broadcast %9 : vector<8x1xf32> to vector<8x256xf32>
    %11 = arith.mulf %0, %10 : vector<8x256xf32>
    %12 = vector.broadcast %1 : vector<1x256xf32> to vector<8x256xf32>
    %13 = arith.mulf %11, %12 : vector<8x256xf32>
    %14 = arith.truncf %13 : vector<8x256xf32> to vector<8x256xbf16>
    %c0_5 = arith.constant 0 : index
    %c0_6 = arith.constant 0 : index
    %15 = vector.load %arg2[%c0_5, %c0_6] : memref<256x512xbf16, #tpu.memory_space<vmem>>, vector<256x512xbf16>
    %cst_7 = arith.constant dense<0.000000e+00> : vector<8x512xf32>
    %16 = tpu.matmul %14, %15, %cst_7 {dimension_numbers = #tpu.dot_dimension_numbers<[1], [0], [0], [1], [0, 0, 1, 1], [], []>} : vector<8x256xbf16>, vector<256x512xbf16>, vector<8x512xf32> -> vector<8x512xf32>
    %17 = vector.extract_strided_slice %16 {offsets = [0, 0], sizes = [8, 256], strides = [1, 1]} : vector<8x512xf32> to vector<8x256xf32>
    %18 = vector.extract_strided_slice %16 {offsets = [0, 256], sizes = [8, 128], strides = [1, 1]} : vector<8x512xf32> to vector<8x128xf32>
    %19 = vector.extract_strided_slice %16 {offsets = [0, 384], sizes = [8, 128], strides = [1, 1]} : vector<8x512xf32> to vector<8x128xf32>
    %c0_8 = arith.constant 0 : index
    %c0_9 = arith.constant 0 : index
    %20 = vector.load %arg3[%c0_8, %c0_9] : memref<8x128xf32, #tpu.memory_space<vmem>>, vector<8x128xf32>
    %c0_10 = arith.constant 0 : index
    %c0_11 = arith.constant 0 : index
    %21 = vector.load %arg4[%c0_10, %c0_11] : memref<8x128xf32, #tpu.memory_space<vmem>>, vector<8x128xf32>
    %22 = vector.extract_strided_slice %17 {offsets = [0, 0], sizes = [8, 128], strides = [1, 1]} : vector<8x256xf32> to vector<8x128xf32>
    %23 = arith.mulf %22, %20 : vector<8x128xf32>
    %c64_i32 = arith.constant 64 : i32
    %24 = tpu.dynamic_rotate %22 by %c64_i32 dim 1 : vector<8x128xf32>, i32 -> vector<8x128xf32>
    %25 = arith.mulf %24, %21 : vector<8x128xf32>
    %26 = arith.addf %23, %25 : vector<8x128xf32>
    %27 = vector.extract_strided_slice %17 {offsets = [0, 128], sizes = [8, 128], strides = [1, 1]} : vector<8x256xf32> to vector<8x128xf32>
    %28 = arith.mulf %27, %20 : vector<8x128xf32>
    %c64_i32_12 = arith.constant 64 : i32
    %29 = tpu.dynamic_rotate %27 by %c64_i32_12 dim 1 : vector<8x128xf32>, i32 -> vector<8x128xf32>
    %30 = arith.mulf %29, %21 : vector<8x128xf32>
    %31 = arith.addf %28, %30 : vector<8x128xf32>
    %32 = tpu.iota {dimensions = array<i32: 0>} : vector<16x8xi32>
    %33 = tpu.iota {dimensions = array<i32: 1>} : vector<16x8xi32>
    %c8_i32 = arith.constant 8 : i32
    %c0_i32 = arith.constant 0 : i32
    %34 = arith.cmpi eq, %c8_i32, %c0_i32 : i32
    %c1_i32 = arith.constant 1 : i32
    %35 = arith.select %34, %c1_i32, %c8_i32 : i32
    %36 = vector.broadcast %35 : i32 to vector<16x8xi32>
    %37 = arith.remsi %32, %36 : vector<16x8xi32>
    %c0_i32_13 = arith.constant 0 : i32
    %38 = vector.broadcast %c0_i32_13 : i32 to vector<16x8xi32>
    %39 = arith.cmpi ne, %37, %38 : vector<16x8xi32>
    %c0_i32_14 = arith.constant 0 : i32
    %40 = vector.broadcast %c0_i32_14 : i32 to vector<16x8xi32>
    %41 = arith.cmpi slt, %37, %40 : vector<16x8xi32>
    %c0_i32_15 = arith.constant 0 : i32
    %42 = arith.cmpi slt, %35, %c0_i32_15 : i32
    %43 = vector.broadcast %42 : i1 to vector<16x8xi1>
    %44 = vector.broadcast %43 : vector<16x8xi1> to vector<16x8xi1>
    %45 = arith.xori %41, %44 : vector<16x8xi1>
    %46 = arith.andi %45, %39 : vector<16x8xi1>
    %47 = vector.broadcast %35 : i32 to vector<16x8xi32>
    %48 = arith.addi %37, %47 : vector<16x8xi32>
    %49 = arith.select %46, %48, %37 : vector<16x8xi1>, vector<16x8xi32>
    %50 = arith.cmpi sle, %33, %49 : vector<16x8xi32>
    %51 = arith.mulf %18, %20 : vector<8x128xf32>
    %c64_i32_16 = arith.constant 64 : i32
    %52 = tpu.dynamic_rotate %18 by %c64_i32_16 dim 1 : vector<8x128xf32>, i32 -> vector<8x128xf32>
    %53 = arith.mulf %52, %21 : vector<8x128xf32>
    %54 = arith.addf %51, %53 : vector<8x128xf32>
    %55 = arith.truncf %54 : vector<8x128xf32> to vector<8x128xbf16>
    %56 = arith.truncf %19 : vector<8x128xf32> to vector<8x128xbf16>
    %57 = tpu.concatenate %26, %31 in 0 : vector<8x128xf32>, vector<8x128xf32> -> vector<16x128xf32>
    %58 = arith.truncf %57 : vector<16x128xf32> to vector<16x128xbf16>
    %cst_17 = arith.constant dense<0.000000e+00> : vector<16x8xf32>
    %59 = tpu.matmul %58, %55, %cst_17 {dimension_numbers = #tpu.dot_dimension_numbers<[1], [1], [0], [0], [0, 0, 1, 0], [], []>} : vector<16x128xbf16>, vector<8x128xbf16>, vector<16x8xf32> -> vector<16x8xf32>
    %cst_18 = arith.constant -1.000000e+30 : f32
    %60 = vector.broadcast %cst_18 : f32 to vector<16x8xf32>
    %61 = arith.select %50, %59, %60 : vector<16x8xi1>, vector<16x8xf32>
    %cst_19 = arith.constant dense<0xFF800000> : vector<16xf32>
    %62 = vector.multi_reduction <maximumf>, %61, %cst_19 [1] : vector<16x8xf32> to vector<16xf32>
    %63 = vector.shape_cast %62 : vector<16xf32> to vector<16x1xf32>
    %64 = vector.broadcast %63 : vector<16x1xf32> to vector<16x8xf32>
    %65 = arith.subf %61, %64 : vector<16x8xf32>
    %66 = math.exp %65 : vector<16x8xf32>
    %cst_20 = arith.constant dense<0.000000e+00> : vector<16xf32>
    %67 = vector.multi_reduction <add>, %66, %cst_20 [1] : vector<16x8xf32> to vector<16xf32>
    %68 = vector.shape_cast %67 : vector<16xf32> to vector<16x1xf32>
    %69 = vector.broadcast %68 : vector<16x1xf32> to vector<16x8xf32>
    %70 = arith.divf %66, %69 : vector<16x8xf32>
    %71 = arith.truncf %70 : vector<16x8xf32> to vector<16x8xbf16>
    %cst_21 = arith.constant dense<0.000000e+00> : vector<16x128xf32>
    %72 = tpu.matmul %71, %56, %cst_21 {dimension_numbers = #tpu.dot_dimension_numbers<[1], [0], [0], [1], [0, 0, 1, 1], [], []>} : vector<16x8xbf16>, vector<8x128xbf16>, vector<16x128xf32> -> vector<16x128xf32>
    %73 = vector.extract_strided_slice %72 {offsets = [0, 0], sizes = [8, 128], strides = [1, 1]} : vector<16x128xf32> to vector<8x128xf32>
    %74 = vector.extract_strided_slice %72 {offsets = [8, 0], sizes = [8, 128], strides = [1, 1]} : vector<16x128xf32> to vector<8x128xf32>
    %75 = tpu.concatenate %73, %74 in 1 : vector<8x128xf32>, vector<8x128xf32> -> vector<8x256xf32>
    %76 = arith.truncf %75 : vector<8x256xf32> to vector<8x256xbf16>
    %c0_22 = arith.constant 0 : index
    %c0_23 = arith.constant 0 : index
    %77 = vector.load %arg5[%c0_22, %c0_23] : memref<256x256xbf16, #tpu.memory_space<vmem>>, vector<256x256xbf16>
    %cst_24 = arith.constant dense<0.000000e+00> : vector<8x256xf32>
    %78 = tpu.matmul %76, %77, %cst_24 {dimension_numbers = #tpu.dot_dimension_numbers<[1], [0], [0], [1], [0, 0, 1, 1], [], []>} : vector<8x256xbf16>, vector<256x256xbf16>, vector<8x256xf32> -> vector<8x256xf32>
    %79 = arith.addf %78, %0 : vector<8x256xf32>
    %c0_25 = arith.constant 0 : index
    %c0_26 = arith.constant 0 : index
    %80 = vector.load %arg10[%c0_25, %c0_26] : memref<8x256xf32, #tpu.memory_space<vmem>>, vector<8x256xf32>
    tpu.vector_store %arg10[%c0_25, %c0_26], %79 {strides = array<i32>} : memref<8x256xf32, #tpu.memory_space<vmem>>, vector<8x256xf32>,
    %c0_27 = arith.constant 0 : index
    %c0_28 = arith.constant 0 : index
    %81 = vector.load %arg6[%c0_27, %c0_28] : memref<1x256xf32, #tpu.memory_space<vmem>>, vector<1x256xf32>
    %82 = arith.mulf %79, %79 : vector<8x256xf32>
    %cst_29 = arith.constant dense<0.000000e+00> : vector<8xf32>
    %83 = vector.multi_reduction <add>, %82, %cst_29 [1] : vector<8x256xf32> to vector<8xf32>
    %84 = vector.shape_cast %83 : vector<8xf32> to vector<8x1xf32>
    %cst_30 = arith.constant 2.560000e+02 : f32
    %85 = vector.broadcast %cst_30 : f32 to vector<8x1xf32>
    %86 = arith.divf %84, %85 : vector<8x1xf32>
    %cst_31 = arith.constant 9.99999997E-7 : f32
    %87 = vector.broadcast %cst_31 : f32 to vector<8x1xf32>
    %88 = arith.addf %86, %87 : vector<8x1xf32>
    %89 = math.rsqrt %88 : vector<8x1xf32>
    %90 = vector.broadcast %89 : vector<8x1xf32> to vector<8x256xf32>
    %91 = arith.mulf %79, %90 : vector<8x256xf32>
    %92 = vector.broadcast %81 : vector<1x256xf32> to vector<8x256xf32>
    %93 = arith.mulf %91, %92 : vector<8x256xf32>
    %94 = arith.truncf %93 : vector<8x256xf32> to vector<8x256xbf16>
    %c0_32 = arith.constant 0 : index
    %c0_33 = arith.constant 0 : index
    %95 = vector.load %arg7[%c0_32, %c0_33] : memref<256x1024xbf16, #tpu.memory_space<vmem>>, vector<256x1024xbf16>
    %cst_34 = arith.constant dense<0.000000e+00> : vector<8x1024xf32>
    %96 = tpu.matmul %94, %95, %cst_34 {dimension_numbers = #tpu.dot_dimension_numbers<[1], [0], [0], [1], [0, 0, 1, 1], [], []>} : vector<8x256xbf16>, vector<256x1024xbf16>, vector<8x1024xf32> -> vector<8x1024xf32>
    %97 = vector.extract_strided_slice %96 {offsets = [0, 0], sizes = [8, 512], strides = [1, 1]} : vector<8x1024xf32> to vector<8x512xf32>
    %98 = vector.extract_strided_slice %96 {offsets = [0, 512], sizes = [8, 512], strides = [1, 1]} : vector<8x1024xf32> to vector<8x512xf32>
    %cst_35 = arith.constant 0.000000e+00 : f32
    %99 = vector.broadcast %cst_35 : f32 to vector<8x512xf32>
    %100 = arith.subf %99, %97 : vector<8x512xf32>
    %101 = math.exp %100 : vector<8x512xf32>
    %cst_36 = arith.constant 1.000000e+00 : f32
    %102 = vector.broadcast %cst_36 : f32 to vector<8x512xf32>
    %103 = arith.addf %102, %101 : vector<8x512xf32>
    %104 = tpu.reciprocal %103 {approx = true} : vector<8x512xf32> -> vector<8x512xf32>
    %105 = arith.mulf %97, %104 : vector<8x512xf32>
    %106 = arith.mulf %105, %98 : vector<8x512xf32>
    %107 = arith.truncf %106 : vector<8x512xf32> to vector<8x512xbf16>
    %c0_37 = arith.constant 0 : index
    %c0_38 = arith.constant 0 : index
    %108 = vector.load %arg8[%c0_37, %c0_38] : memref<512x256xbf16, #tpu.memory_space<vmem>>, vector<512x256xbf16>
    %cst_39 = arith.constant dense<0.000000e+00> : vector<8x256xf32>
    %109 = tpu.matmul %107, %108, %cst_39 {dimension_numbers = #tpu.dot_dimension_numbers<[1], [0], [0], [1], [0, 0, 1, 1], [], []>} : vector<8x512xbf16>, vector<512x256xbf16>, vector<8x256xf32> -> vector<8x256xf32>
    %c0_40 = arith.constant 0 : index
    %c0_41 = arith.constant 0 : index
    %110 = vector.load %arg9[%c0_40, %c0_41] : memref<8x256xf32, #tpu.memory_space<vmem>>, vector<8x256xf32>
    tpu.vector_store %arg9[%c0_40, %c0_41], %109 {strides = array<i32>} : memref<8x256xf32, #tpu.memory_space<vmem>>, vector<8x256xf32>,
    return
  }
}

</mosaic_0001>

<llo_original>
// kernel: _fused_forward.1
$region0: #{_fused_forward.1}
  #allocation0 [shape = 'u32[]', space=smem, size = 0x4, offset = 0x4, fixed_abs, tag = 'smem constant byte address 0x4 - core index']
  #allocation1 [shape = 'u32[72,128]{1,0:T(1,128)}', space=vmem, size = 0x9000, scoped, tag = 'internal scratch']
  %s0 = inlined_call_operand.vmem [shape: f32[8,256], index: 0, kind: input, shape index: {}]
  %s1 = inlined_call_operand.vmem [shape: f32[1,256], index: 1, kind: input, shape index: {}]
  %s2 = inlined_call_operand.hbm [shape: bf16[256,512], index: 2, kind: input, shape index: {}]
  %s3 = inlined_call_operand.vmem [shape: f32[8,128], index: 3, kind: input, shape index: {}]
  %s4 = inlined_call_operand.vmem [shape: f32[8,128], index: 4, kind: input, shape index: {}]
  %s5 = inlined_call_operand.hbm [shape: bf16[256,256], index: 5, kind: input, shape index: {}]
  %s6 = inlined_call_operand.vmem [shape: f32[1,256], index: 6, kind: input, shape index: {}]
  %s7 = inlined_call_operand.hbm [shape: bf16[256,1024], index: 7, kind: input, shape index: {}]
  %s8 = inlined_call_operand.hbm [shape: bf16[512,256], index: 8, kind: input, shape index: {}]
  %s9 = inlined_call_operand.hbm [shape: f32[8,256], index: 9, kind: output, shape index: {0}]
  %s10 = inlined_call_operand.hbm [shape: f32[8,256], index: 10, kind: output, shape index: {1}]
  %11 = xla_tuple %s9, %s10
  %s12 = sld [smem:[#allocation0]]
  $region70: #{_fused_forward.1} parent=0
    _
  %s14 = ssub.s32 1, %s12
  %s15 = scalar_select 0, %s14, %s12
  $region1: #{_fused_forward.1} parent=0
    #allocation2 [shape = 'u8[262144]{0}', space=vmem, size = 0x40000, scoped, tag = 'input window, operand 2, single buffered']
    #allocation3 [shape = 's32[1]{0}', space=sflag, size = 0x4, scoped, tag = 'scoped memory for _fused_forward.1']
    #allocation4 [shape = 's32[1]{0}', space=sflag, size = 0x4, scoped, tag = 'scoped memory for _fused_forward.1']
    #allocation5 [shape = 'u8[131072]{0}', space=vmem, size = 0x20000, scoped, tag = 'input window, operand 5, single buffered']
    #allocation6 [shape = 's32[1]{0}', space=sflag, size = 0x4, scoped, tag = 'scoped memory for _fused_forward.1']
    #allocation7 [shape = 'u8[524288]{0}', space=vmem, size = 0x80000, scoped, tag = 'input window, operand 7, single buffered']
    #allocation8 [shape = 'u8[262144]{0}', space=vmem, size = 0x40000, scoped, tag = 'input window, operand 8, single buffered']
    #allocation9 [shape = 's32[1]{0}', space=sflag, size = 0x4, scoped, tag = 'scoped memory for _fused_forward.1']
    #allocation10 [shape = 'u8[8192]{0}', space=vmem, size = 0x2000, scoped, tag = 'output window, operand 0, single buffered']
    #allocation11 [shape = 'u8[8192]{0}', space=vmem, size = 0x2000, scoped, tag = 'output window, operand 1, single buffered']
    #allocation12 [shape = 's32[1]{0}', space=sflag, size = 0x4, scoped, tag = 'scoped memory for _fused_forward.1']
    %16 = vsyncpa [#allocation3], 0
    %17 = vsyncpa [#allocation6], 0
    %18 = vsyncpa [#allocation9], 0
    %19 = vsyncpa [#allocation4], 0
    %20 = vsyncpa [#allocation12], 0
    // Predicated region
    $region2: #{_fused_forward.1} parent=1 // pred_check
      _
    $region3: #{_fused_forward.1} parent=1 // pred_check_branch
      %22 = sbr.rel (0) target = $region5
    $region4: #{_fused_forward.1} parent=1 // pred_region
      _
    $region5: #{_fused_forward.1} parent=1 // pred_fallthru
      _
    // Predicated region
    $region6: #{_fused_forward.1} parent=1 // pred_check
      _
    $region7: #{_fused_forward.1} parent=1 // pred_check_branch
      %24 = sbr.rel (0) target = $region9
    $region8: #{_fused_forward.1} parent=1 // pred_region
      _
    $region9: #{_fused_forward.1} parent=1 // pred_fallthru
      _
    // Predicated region
    $region10: #{_fused_forward.1} parent=1 // pred_check
      _
    $region11: #{_fused_forward.1} parent=1 // pred_check_branch
      %26 = sbr.rel (0) target = $region13
    $region12: #{_fused_forward.1} parent=1 // pred_region
      %28 = vsyncadd [#allocation3], 0
      %s29 = sshll.u32 %s2, 4
      %s30 = int_to_ptr.hbm [resolvable:$true] %s29
      %s31 = sshll.u32 [#allocation2], 4
      %s32 = int_to_ptr.vmem [resolvable:$true] %s31
      %37 = dma.hbm_to_vmem [thread:$0]  %s30, 8192, %s32, [#allocation3], 256, 256, 16
    $region13: #{_fused_forward.1} parent=1 // pred_fallthru
      _
    // Predicated region
    $region14: #{_fused_forward.1} parent=1 // pred_check
      _
    $region15: #{_fused_forward.1} parent=1 // pred_check_branch
      %39 = sbr.rel (0) target = $region17
    $region16: #{_fused_forward.1} parent=1 // pred_region
      _
    $region17: #{_fused_forward.1} parent=1 // pred_fallthru
      _
    // Predicated region
    $region18: #{_fused_forward.1} parent=1 // pred_check
      _
    $region19: #{_fused_forward.1} parent=1 // pred_check_branch
      %41 = sbr.rel (0) target = $region21
    $region20: #{_fused_forward.1} parent=1 // pred_region
      _
    $region21: #{_fused_forward.1} parent=1 // pred_fallthru
      _
    // Predicated region
    $region22: #{_fused_forward.1} parent=1 // pred_check
      _
    $region23: #{_fused_forward.1} parent=1 // pred_check_branch
      %43 = sbr.rel (0) target = $region25
    $region24: #{_fused_forward.1} parent=1 // pred_region
      %45 = vsyncadd [#allocation6], 0
      %s46 = sshll.u32 %s5, 4
      %s47 = int_to_ptr.hbm [resolvable:$true] %s46
      %s48 = sshll.u32 [#allocation5], 4
      %s49 = int_to_ptr.vmem [resolvable:$true] %s48
      %54 = dma.hbm_to_vmem [thread:$0]  %s47, 4096, %s49, [#allocation6], 128, 128, 8
    $region25: #{_fused_forward.1} parent=1 // pred_fallthru
      _
    // Predicated region
    $region26: #{_fused_forward.1} parent=1 // pred_check
      _
    $region27: #{_fused_forward.1} parent=1 // pred_check_branch
      %56 = sbr.rel (0) target = $region29
    $region28: #{_fused_forward.1} parent=1 // pred_region
      _
    $region29: #{_fused_forward.1} parent=1 // pred_fallthru
      _
    // Predicated region
    $region30: #{_fused_forward.1} parent=1 // pred_check
      _
    $region31: #{_fused_forward.1} parent=1 // pred_check_branch
      %58 = sbr.rel (0) target = $region33
    $region32: #{_fused_forward.1} parent=1 // pred_region
      %60 = vsyncadd [#allocation6], 0
      %s61 = sshll.u32 %s7, 4
      %s62 = int_to_ptr.hbm [resolvable:$true] %s61
      %s63 = sshll.u32 [#allocation7], 4
      %s64 = int_to_ptr.vmem [resolvable:$true] %s63
      %69 = dma.hbm_to_vmem [thread:$0]  %s62, 16384, %s64, [#allocation6], 512, 512, 32
    $region33: #{_fused_forward.1} parent=1 // pred_fallthru
      _
    // Predicated region
    $region34: #{_fused_forward.1} parent=1 // pred_check
      _
    $region35: #{_fused_forward.1} parent=1 // pred_check_branch
      %71 = sbr.rel (0) target = $region37
    $region36: #{_fused_forward.1} parent=1 // pred_region
      %73 = vsyncadd [#allocation9], 0
      %s74 = sshll.u32 %s8, 4
      %s75 = int_to_ptr.hbm [resolvable:$true] %s74
      %s76 = sshll.u32 [#allocation8], 4
      %s77 = int_to_ptr.vmem [resolvable:$true] %s76
      %82 = dma.hbm_to_vmem [thread:$0]  %s75, 8192, %s77, [#allocation9], 128, 128, 8
    $region37: #{_fused_forward.1} parent=1 // pred_fallthru
      _
    // Predicated region
    $region38: #{_fused_forward.1} parent=1 // pred_check
      _
    $region39: #{_fused_forward.1} parent=1 // pred_check_branch
      %84 = sbr.rel (0) target = $region41
    $region40: #{_fused_forward.1} parent=1 // pred_region
      %86 = dma.done [#allocation3], 8192
    $region41: #{_fused_forward.1} parent=1 // pred_fallthru
      _
    // Predicated region
    $region42: #{_fused_forward.1} parent=1 // pred_check
      _
    $region43: #{_fused_forward.1} parent=1 // pred_check_branch
      %88 = sbr.rel (0) target = $region45
    $region44: #{_fused_forward.1} parent=1 // pred_region
      %90 = dma.done [#allocation6], 4096
    $region45: #{_fused_forward.1} parent=1 // pred_fallthru
      _
    // Predicated region
    $region46: #{_fused_forward.1} parent=1 // pred_check
      _
    $region47: #{_fused_forward.1} parent=1 // pred_check_branch
      %92 = sbr.rel (0) target = $region49
    $region48: #{_fused_forward.1} parent=1 // pred_region
      %94 = dma.done [#allocation6], 16384
    $region49: #{_fused_forward.1} parent=1 // pred_fallthru
      _
    // Predicated region
    $region50: #{_fused_forward.1} parent=1 // pred_check
      _
    $region51: #{_fused_forward.1} parent=1 // pred_check_branch
      %96 = sbr.rel (0) target = $region53
    $region52: #{_fused_forward.1} parent=1 // pred_region
      %98 = dma.done [#allocation9], 8192
    $region53: #{_fused_forward.1} parent=1 // pred_fallthru
      _
    %v100 = vld [vmem:[%s0] sm:$0xff]
    %v101 = vld [vmem:[%s0 + $0x8] sm:$0xff]
    %v102 = vld [vmem:[%s1] sm:$0x3]
    %v103 = vmul.f32 %v100, %v100
    %v104 = vmul.f32 %v101, %v101
    %v105 = vadd.f32 %v103, %v104
    %106 = vadd.xlane.f32.xlu0 %v105
    %v107 = vpop.xlane.xlu0 %106
    %v108 = vrcp.pop 256.0
    %v109 = vmul.f32 256.0, %v108
    %v110 = vsub.f32 1.0, %v109
    %v111 = vmul.f32 %v108, %v110
    %v112 = vadd.f32 %v108, %v111
    %vm113 = vweird.f32 %v108
    %v114 = vsel %vm113, %v108, %v112
    %v115 = vmul.f32 %v107, %v114
    %v116 = vadd.f32 %v115, 1e-06
    %v117 = vrsqrt.pop %v116
    %v118 = vmul.f32 %v117, %v116
    %v119 = vmul.f32 %v118, %v117
    %v120 = vmul.f32 0.5, %v119
    %v121 = vsub.f32 1.5, %v120
    %v122 = vmul.f32 %v117, %v121
    %vm123 = vweird.f32 %v116
    %vm124 = vweird.f32 %v117
    %vm125 = vmor %vm123, %vm124
    %v126 = vsel %vm125, %v117, %v122
    %v127 = vmul.f32 %v100, %v126
    %v128 = vmul.f32 %v101, %v126
    %v130 = vperm.slane %v102, 0
    %v131 = vperm.slane %v102, 1
    %v134 = vmul.f32 %v127, %v130
    %v135 = vmul.f32 %v128, %v131
    %v136 = vpack.c.bf16 %v134, %v134
    %v137 = vpack.c.bf16 %v135, %v135
    %v138 = vld [vmem:[#allocation2] sm:$0xff]
    %v139 = vld [vmem:[#allocation2 + $0x8] sm:$0xff]
    %v140 = vld [vmem:[#allocation2 + $0x10] sm:$0xff]
    %v141 = vld [vmem:[#allocation2 + $0x18] sm:$0xff]
    %v142 = vld [vmem:[#allocation2 + $0x20] sm:$0xff]
    %v143 = vld [vmem:[#allocation2 + $0x28] sm:$0xff]
    %v144 = vld [vmem:[#allocation2 + $0x30] sm:$0xff]
    %v145 = vld [vmem:[#allocation2 + $0x38] sm:$0xff]
    %v146 = vld [vmem:[#allocation2 + $0x40] sm:$0xff]
    %v147 = vld [vmem:[#allocation2 + $0x48] sm:$0xff]
    %v148 = vld [vmem:[#allocation2 + $0x50] sm:$0xff]
    %v149 = vld [vmem:[#allocation2 + $0x58] sm:$0xff]
    %v150 = vld [vmem:[#allocation2 + $0x60] sm:$0xff]
    %v151 = vld [vmem:[#allocation2 + $0x68] sm:$0xff]
    %v152 = vld [vmem:[#allocation2 + $0x70] sm:$0xff]
    %v153 = vld [vmem:[#allocation2 + $0x78] sm:$0xff]
    %v154 = vld [vmem:[#allocation2 + $0x80] sm:$0xff]
    %v155 = vld [vmem:[#allocation2 + $0x88] sm:$0xff]
    %v156 = vld [vmem:[#allocation2 + $0x90] sm:$0xff]
    %v157 = vld [vmem:[#allocation2 + $0x98] sm:$0xff]
    %v158 = vld [vmem:[#allocation2 + $0xa0] sm:$0xff]
    %v159 = vld [vmem:[#allocation2 + $0xa8] sm:$0xff]
    %v160 = vld [vmem:[#allocation2 + $0xb0] sm:$0xff]
    %v161 = vld [vmem:[#allocation2 + $0xb8] sm:$0xff]
    %v162 = vld [vmem:[#allocation2 + $0xc0] sm:$0xff]
    %v163 = vld [vmem:[#allocation2 + $0xc8] sm:$0xff]
    %v164 = vld [vmem:[#allocation2 + $0xd0] sm:$0xff]
    %v165 = vld [vmem:[#allocation2 + $0xd8] sm:$0xff]
    %v166 = vld [vmem:[#allocation2 + $0xe0] sm:$0xff]
    %v167 = vld [vmem:[#allocation2 + $0xe8] sm:$0xff]
    %v168 = vld [vmem:[#allocation2 + $0xf0] sm:$0xff]
    %v169 = vld [vmem:[#allocation2 + $0xf8] sm:$0xff]
    %v170 = vld [vmem:[#allocation2 + $0x100] sm:$0xff]
    %v171 = vld [vmem:[#allocation2 + $0x108] sm:$0xff]
    %v172 = vld [vmem:[#allocation2 + $0x110] sm:$0xff]
    %v173 = vld [vmem:[#allocation2 + $0x118] sm:$0xff]
    %v174 = vld [vmem:[#allocation2 + $0x120] sm:$0xff]
    %v175 = vld [vmem:[#allocation2 + $0x128] sm:$0xff]
    %v176 = vld [vmem:[#allocation2 + $0x130] sm:$0xff]
    %v177 = vld [vmem:[#allocation2 + $0x138] sm:$0xff]
    %v178 = vld [vmem:[#allocation2 + $0x140] sm:$0xff]
    %v179 = vld [vmem:[#allocation2 + $0x148] sm:$0xff]
    %v180 = vld [vmem:[#allocation2 + $0x150] sm:$0xff]
    %v181 = vld [vmem:[#allocation2 + $0x158] sm:$0xff]
    %v182 = vld [vmem:[#allocation2 + $0x160] sm:$0xff]
    %v183 = vld [vmem:[#allocation2 + $0x168] sm:$0xff]
    %v184 = vld [vmem:[#allocation2 + $0x170] sm:$0xff]
    %v185 = vld [vmem:[#allocation2 + $0x178] sm:$0xff]
    %v186 = vld [vmem:[#allocation2 + $0x180] sm:$0xff]
    %v187 = vld [vmem:[#allocation2 + $0x188] sm:$0xff]
    %v188 = vld [vmem:[#allocation2 + $0x190] sm:$0xff]
    %v189 = vld [vmem:[#allocation2 + $0x198] sm:$0xff]
    %v190 = vld [vmem:[#allocation2 + $0x1a0] sm:$0xff]
    %v191 = vld [vmem:[#allocation2 + $0x1a8] sm:$0xff]
    %v192 = vld [vmem:[#allocation2 + $0x1b0] sm:$0xff]
    %v193 = vld [vmem:[#allocation2 + $0x1b8] sm:$0xff]
    %v194 = vld [vmem:[#allocation2 + $0x1c0] sm:$0xff]
    %v195 = vld [vmem:[#allocation2 + $0x1c8] sm:$0xff]
    %v196 = vld [vmem:[#allocation2 + $0x1d0] sm:$0xff]
    %v197 = vld [vmem:[#allocation2 + $0x1d8] sm:$0xff]
    %v198 = vld [vmem:[#allocation2 + $0x1e0] sm:$0xff]
    %v199 = vld [vmem:[#allocation2 + $0x1e8] sm:$0xff]
    %v200 = vld [vmem:[#allocation2 + $0x1f0] sm:$0xff]
    %v201 = vld [vmem:[#allocation2 + $0x1f8] sm:$0xff]
    %v266 = vunpack.c.l.b16 %v138
    %v267 = vunpack.c.h.b16 %v138
    %v268 = vunpack.c.l.b16 %v139
    %v269 = vunpack.c.h.b16 %v139
    %v270 = vunpack.c.l.b16 %v140
    %v271 = vunpack.c.h.b16 %v140
    %v272 = vunpack.c.l.b16 %v141
    %v273 = vunpack.c.h.b16 %v141
    %v274 = vunpack.c.l.b16 %v142
    %v275 = vunpack.c.h.b16 %v142
    %v276 = vunpack.c.l.b16 %v143
    %v277 = vunpack.c.h.b16 %v143
    %v278 = vunpack.c.l.b16 %v144
    %v279 = vunpack.c.h.b16 %v144
    %v280 = vunpack.c.l.b16 %v145
    %v281 = vunpack.c.h.b16 %v145
    %v282 = vunpack.c.l.b16 %v146
    %v283 = vunpack.c.h.b16 %v146
    %v284 = vunpack.c.l.b16 %v147
    %v285 = vunpack.c.h.b16 %v147
    %v286 = vunpack.c.l.b16 %v148
    %v287 = vunpack.c.h.b16 %v148
    %v288 = vunpack.c.l.b16 %v149
    %v289 = vunpack.c.h.b16 %v149
    %v290 = vunpack.c.l.b16 %v150
    %v291 = vunpack.c.h.b16 %v150
    %v292 = vunpack.c.l.b16 %v151
    %v293 = vunpack.c.h.b16 %v151
    %v294 = vunpack.c.l.b16 %v152
    %v295 = vunpack.c.h.b16 %v152
    %v296 = vunpack.c.l.b16 %v153
    %v297 = vunpack.c.h.b16 %v153
    %v298 = vunpack.c.l.b16 %v154
    %v299 = vunpack.c.h.b16 %v154
    %v300 = vunpack.c.l.b16 %v155
    %v301 = vunpack.c.h.b16 %v155
    %v302 = vunpack.c.l.b16 %v156
    %v303 = vunpack.c.h.b16 %v156
    %v304 = vunpack.c.l.b16 %v157
    %v305 = vunpack.c.h.b16 %v157
    %v306 = vunpack.c.l.b16 %v158
    %v307 = vunpack.c.h.b16 %v158
    %v308 = vunpack.c.l.b16 %v159
    %v309 = vunpack.c.h.b16 %v159
    %v310 = vunpack.c.l.b16 %v160
    %v311 = vunpack.c.h.b16 %v160
    %v312 = vunpack.c.l.b16 %v161
    %v313 = vunpack.c.h.b16 %v161
    %v314 = vunpack.c.l.b16 %v162
    %v315 = vunpack.c.h.b16 %v162
    %v316 = vunpack.c.l.b16 %v163
    %v317 = vunpack.c.h.b16 %v163
    %v318 = vunpack.c.l.b16 %v164
    %v319 = vunpack.c.h.b16 %v164
    %v320 = vunpack.c.l.b16 %v165
    %v321 = vunpack.c.h.b16 %v165
    %v322 = vunpack.c.l.b16 %v166
    %v323 = vunpack.c.h.b16 %v166
    %v324 = vunpack.c.l.b16 %v167
    %v325 = vunpack.c.h.b16 %v167
    %v326 = vunpack.c.l.b16 %v168
    %v327 = vunpack.c.h.b16 %v168
    %v328 = vunpack.c.l.b16 %v169
    %v329 = vunpack.c.h.b16 %v169
    %v330 = vunpack.c.l.b16 %v170
    %v331 = vunpack.c.h.b16 %v170
    %v332 = vunpack.c.l.b16 %v171
    %v333 = vunpack.c.h.b16 %v171
    %v334 = vunpack.c.l.b16 %v172
    %v335 = vunpack.c.h.b16 %v172
    %v336 = vunpack.c.l.b16 %v173
    %v337 = vunpack.c.h.b16 %v173
    %v338 = vunpack.c.l.b16 %v174
    %v339 = vunpack.c.h.b16 %v174
    %v340 = vunpack.c.l.b16 %v175
    %v341 = vunpack.c.h.b16 %v175
    %v342 = vunpack.c.l.b16 %v176
    %v343 = vunpack.c.h.b16 %v176
    %v344 = vunpack.c.l.b16 %v177
    %v345 = vunpack.c.h.b16 %v177
    %v346 = vunpack.c.l.b16 %v178
    %v347 = vunpack.c.h.b16 %v178
    %v348 = vunpack.c.l.b16 %v179
    %v349 = vunpack.c.h.b16 %v179
    %v350 = vunpack.c.l.b16 %v180
    %v351 = vunpack.c.h.b16 %v180
    %v352 = vunpack.c.l.b16 %v181
    %v353 = vunpack.c.h.b16 %v181
    %v354 = vunpack.c.l.b16 %v182
    %v355 = vunpack.c.h.b16 %v182
    %v356 = vunpack.c.l.b16 %v183
    %v357 = vunpack.c.h.b16 %v183
    %v358 = vunpack.c.l.b16 %v184
    %v359 = vunpack.c.h.b16 %v184
    %v360 = vunpack.c.l.b16 %v185
    %v361 = vunpack.c.h.b16 %v185
    %v362 = vunpack.c.l.b16 %v186
    %v363 = vunpack.c.h.b16 %v186
    %v364 = vunpack.c.l.b16 %v187
    %v365 = vunpack.c.h.b16 %v187
    %v366 = vunpack.c.l.b16 %v188
    %v367 = vunpack.c.h.b16 %v188
    %v368 = vunpack.c.l.b16 %v189
    %v369 = vunpack.c.h.b16 %v189
    %v370 = vunpack.c.l.b16 %v190
    %v371 = vunpack.c.h.b16 %v190
    %v372 = vunpack.c.l.b16 %v191
    %v373 = vunpack.c.h.b16 %v191
    %v374 = vunpack.c.l.b16 %v192
    %v375 = vunpack.c.h.b16 %v192
    %v376 = vunpack.c.l.b16 %v193
    %v377 = vunpack.c.h.b16 %v193
    %v378 = vunpack.c.l.b16 %v194
    %v379 = vunpack.c.h.b16 %v194
    %v380 = vunpack.c.l.b16 %v195
    %v381 = vunpack.c.h.b16 %v195
    %v382 = vunpack.c.l.b16 %v196
    %v383 = vunpack.c.h.b16 %v196
    %v384 = vunpack.c.l.b16 %v197
    %v385 = vunpack.c.h.b16 %v197
    %v386 = vunpack.c.l.b16 %v198
    %v387 = vunpack.c.h.b16 %v198
    %v388 = vunpack.c.l.b16 %v199
    %v389 = vunpack.c.h.b16 %v199
    %v390 = vunpack.c.l.b16 %v200
    %v391 = vunpack.c.h.b16 %v200
    %v392 = vunpack.c.l.b16 %v201
    %v393 = vunpack.c.h.b16 %v201
    %v394 = vpack.c.b16 %v270, %v266
    %v395 = vpack.c.b16 %v271, %v267
    %v396 = vpack.c.b16 %v272, %v268
    %v397 = vpack.c.b16 %v273, %v269
    %v398 = vpack.c.b16 %v278, %v274
    %v399 = vpack.c.b16 %v279, %v275
    %v400 = vpack.c.b16 %v280, %v276
    %v401 = vpack.c.b16 %v281, %v277
    %v402 = vpack.c.b16 %v286, %v282
    %v403 = vpack.c.b16 %v287, %v283
    %v404 = vpack.c.b16 %v288, %v284
    %v405 = vpack.c.b16 %v289, %v285
    %v406 = vpack.c.b16 %v294, %v290
    %v407 = vpack.c.b16 %v295, %v291
    %v408 = vpack.c.b16 %v296, %v292
    %v409 = vpack.c.b16 %v297, %v293
    %v410 = vpack.c.b16 %v302, %v298
    %v411 = vpack.c.b16 %v303, %v299
    %v412 = vpack.c.b16 %v304, %v300
    %v413 = vpack.c.b16 %v305, %v301
    %v414 = vpack.c.b16 %v310, %v306
    %v415 = vpack.c.b16 %v311, %v307
    %v416 = vpack.c.b16 %v312, %v308
    %v417 = vpack.c.b16 %v313, %v309
    %v418 = vpack.c.b16 %v318, %v314
    %v419 = vpack.c.b16 %v319, %v315
    %v420 = vpack.c.b16 %v320, %v316
    %v421 = vpack.c.b16 %v321, %v317
    %v422 = vpack.c.b16 %v326, %v322
    %v423 = vpack.c.b16 %v327, %v323
    %v424 = vpack.c.b16 %v328, %v324
    %v425 = vpack.c.b16 %v329, %v325
    %v426 = vpack.c.b16 %v334, %v330
    %v427 = vpack.c.b16 %v335, %v331
    %v428 = vpack.c.b16 %v336, %v332
    %v429 = vpack.c.b16 %v337, %v333
    %v430 = vpack.c.b16 %v342, %v338
    %v431 = vpack.c.b16 %v343, %v339
    %v432 = vpack.c.b16 %v344, %v340
    %v433 = vpack.c.b16 %v345, %v341
    %v434 = vpack.c.b16 %v350, %v346
    %v435 = vpack.c.b16 %v351, %v347
    %v436 = vpack.c.b16 %v352, %v348
    %v437 = vpack.c.b16 %v353, %v349
    %v438 = vpack.c.b16 %v358, %v354
    %v439 = vpack.c.b16 %v359, %v355
    %v440 = vpack.c.b16 %v360, %v356
    %v441 = vpack.c.b16 %v361, %v357
    %v442 = vpack.c.b16 %v366, %v362
    %v443 = vpack.c.b16 %v367, %v363
    %v444 = vpack.c.b16 %v368, %v364
    %v445 = vpack.c.b16 %v369, %v365
    %v446 = vpack.c.b16 %v374, %v370
    %v447 = vpack.c.b16 %v375, %v371
    %v448 = vpack.c.b16 %v376, %v372
    %v449 = vpack.c.b16 %v377, %v373
    %v450 = vpack.c.b16 %v382, %v378
    %v451 = vpack.c.b16 %v383, %v379
    %v452 = vpack.c.b16 %v384, %v380
    %v453 = vpack.c.b16 %v385, %v381
    %v454 = vpack.c.b16 %v390, %v386
    %v455 = vpack.c.b16 %v391, %v387
    %v456 = vpack.c.b16 %v392, %v388
    %v457 = vpack.c.b16 %v393, %v389
    %522 = vmatpush.bf16.msra.mxu0 %v422
    %523 = vmatpush.bf16.msra.mxu0 %v418
    %524 = vmatpush.bf16.msra.mxu0 %v414
    %525 = vmatpush.bf16.msra.mxu0 %v410
    %526 = vmatpush.bf16.msra.mxu0 %v406
    %527 = vmatpush.bf16.msra.mxu0 %v402
    %528 = vmatpush.bf16.msra.mxu0 %v398
    %529 = vmatpush.bf16.msra.mxu0 %v394
    %530 = vmatmul.bf16.gmra.mxu0 %v136
    %v531 = vpop.f32.mrf.mxu0
    %v532 = vadd.f32 0.0, %v531
    %v533 = vpop.f32.mrf.mxu0
    %534 = vdwg.mxu0
    %535 = vmatpush.bf16.msra.mxu0 %v454
    %536 = vmatpush.bf16.msra.mxu0 %v450
    %537 = vmatpush.bf16.msra.mxu0 %v446
    %538 = vmatpush.bf16.msra.mxu0 %v442
    %539 = vmatpush.bf16.msra.mxu0 %v438
    %540 = vmatpush.bf16.msra.mxu0 %v434
    %541 = vmatpush.bf16.msra.mxu0 %v430
    %542 = vmatpush.bf16.msra.mxu0 %v426
    %543 = vmatmul.bf16.gmra.mxu0 %v137
    %v544 = vpop.f32.mrf.mxu0
    %v545 = vadd.f32 %v532, %v544
    %v546 = vpop.f32.mrf.mxu0
    %547 = vdwg.mxu0
    %548 = vmatpush.bf16.msra.mxu0 %v423
    %549 = vmatpush.bf16.msra.mxu0 %v419
    %550 = vmatpush.bf16.msra.mxu0 %v415
    %551 = vmatpush.bf16.msra.mxu0 %v411
    %552 = vmatpush.bf16.msra.mxu0 %v407
    %553 = vmatpush.bf16.msra.mxu0 %v403
    %554 = vmatpush.bf16.msra.mxu0 %v399
    %555 = vmatpush.bf16.msra.mxu0 %v395
    %556 = vmatmul.bf16.gmra.mxu0 %v136
    %v557 = vpop.f32.mrf.mxu0
    %v558 = vadd.f32 0.0, %v557
    %v559 = vpop.f32.mrf.mxu0
    %560 = vdwg.mxu0
    %561 = vmatpush.bf16.msra.mxu0 %v455
    %562 = vmatpush.bf16.msra.mxu0 %v451
    %563 = vmatpush.bf16.msra.mxu0 %v447
    %564 = vmatpush.bf16.msra.mxu0 %v443
    %565 = vmatpush.bf16.msra.mxu0 %v439
    %566 = vmatpush.bf16.msra.mxu0 %v435
    %567 = vmatpush.bf16.msra.mxu0 %v431
    %568 = vmatpush.bf16.msra.mxu0 %v427
    %569 = vmatmul.bf16.gmra.mxu0 %v137
    %v570 = vpop.f32.mrf.mxu0
    %v571 = vadd.f32 %v558, %v570
    %v572 = vpop.f32.mrf.mxu0
    %573 = vdwg.mxu0
    %574 = vmatpush.bf16.msra.mxu0 %v424
    %575 = vmatpush.bf16.msra.mxu0 %v420
    %576 = vmatpush.bf16.msra.mxu0 %v416
    %577 = vmatpush.bf16.msra.mxu0 %v412
    %578 = vmatpush.bf16.msra.mxu0 %v408
    %579 = vmatpush.bf16.msra.mxu0 %v404
    %580 = vmatpush.bf16.msra.mxu0 %v400
    %581 = vmatpush.bf16.msra.mxu0 %v396
    %582 = vmatmul.bf16.gmra.mxu0 %v136
    %v583 = vpop.f32.mrf.mxu0
    %v584 = vadd.f32 0.0, %v583
    %v585 = vpop.f32.mrf.mxu0
    %586 = vdwg.mxu0
    %587 = vmatpush.bf16.msra.mxu0 %v456
    %588 = vmatpush.bf16.msra.mxu0 %v452
    %589 = vmatpush.bf16.msra.mxu0 %v448
    %590 = vmatpush.bf16.msra.mxu0 %v444
    %591 = vmatpush.bf16.msra.mxu0 %v440
    %592 = vmatpush.bf16.msra.mxu0 %v436
    %593 = vmatpush.bf16.msra.mxu0 %v432
    %594 = vmatpush.bf16.msra.mxu0 %v428
    %595 = vmatmul.bf16.gmra.mxu0 %v137
    %v596 = vpop.f32.mrf.mxu0
    %v597 = vadd.f32 %v584, %v596
    %v598 = vpop.f32.mrf.mxu0
    %599 = vdwg.mxu0
    %600 = vmatpush.bf16.msra.mxu0 %v425
    %601 = vmatpush.bf16.msra.mxu0 %v421
    %602 = vmatpush.bf16.msra.mxu0 %v417
    %603 = vmatpush.bf16.msra.mxu0 %v413
    %604 = vmatpush.bf16.msra.mxu0 %v409
    %605 = vmatpush.bf16.msra.mxu0 %v405
    %606 = vmatpush.bf16.msra.mxu0 %v401
    %607 = vmatpush.bf16.msra.mxu0 %v397
    %608 = vmatmul.bf16.gmra.mxu0 %v136
    %v609 = vpop.f32.mrf.mxu0
    %v610 = vadd.f32 0.0, %v609
    %v611 = vpop.f32.mrf.mxu0
    %612 = vdwg.mxu0
    %613 = vmatpush.bf16.msra.mxu0 %v457
    %614 = vmatpush.bf16.msra.mxu0 %v453
    %615 = vmatpush.bf16.msra.mxu0 %v449
    %616 = vmatpush.bf16.msra.mxu0 %v445
    %617 = vmatpush.bf16.msra.mxu0 %v441
    %618 = vmatpush.bf16.msra.mxu0 %v437
    %619 = vmatpush.bf16.msra.mxu0 %v433
    %620 = vmatpush.bf16.msra.mxu0 %v429
    %621 = vmatmul.bf16.gmra.mxu0 %v137
    %v622 = vpop.f32.mrf.mxu0
    %v623 = vadd.f32 %v610, %v622
    %v624 = vpop.f32.mrf.mxu0
    %625 = vdwg.mxu0
    %v626 = vld [vmem:[%s3] sm:$0xff]
    %v627 = vld [vmem:[%s4] sm:$0xff]
    %v628 = vmul.f32 %v545, %v626
    %629 = vrot.lane.b32.xlu0 %v545, 64
    %v630 = vpop.permute.xlu0 %629
    %v631 = vmul.f32 %v630, %v627
    %v632 = vadd.f32 %v628, %v631
    %v633 = vmul.f32 %v571, %v626
    %634 = vrot.lane.b32.xlu0 %v571, 64
    %v635 = vpop.permute.xlu0 %634
    %v636 = vmul.f32 %v635, %v627
    %v637 = vadd.f32 %v633, %v636
    %v638 = vlaneseq
    %v639 = vshrl.u32 %v638, 7
    %v640 = vadd.s32 %v639, 8
    %v641 = vlaneseq
    %v642 = vand.u32 %v641, 127
    %vm643 = vcmp.lt.s32.totalorder %v639, 0
    %v644 = vsub.s32 0, %v639
    %v645 = vsel %vm643, %v644, %v639
    %v646 = vshrl.u32 %v645, 3
    %v647 = vand.u32 %v645, 7
    %v648 = vsub.s32 0, %v647
    %v649 = vsel %vm643, %v648, %v647
    %vm650 = vcmp.lt.s32.totalorder %v640, 0
    %v651 = vsub.s32 0, %v640
    %v652 = vsel %vm650, %v651, %v640
    %v653 = vshrl.u32 %v652, 3
    %v654 = vand.u32 %v652, 7
    %v655 = vsub.s32 0, %v654
    %v656 = vsel %vm650, %v655, %v654
    %vm657 = vcmp.ne.s32.totalorder %v649, 0
    %vm658 = vcmp.ne.s32.totalorder %v656, 0
    %vm659 = vcmp.lt.s32.totalorder %v649, 0
    %vm660 = vcmp.lt.s32.totalorder %v656, 0
    %vm661 = vmand %vm659, %vm657
    %vm662 = vmand %vm660, %vm658
    %v663 = vadd.s32 %v649, 8
    %v664 = vadd.s32 %v656, 8
    %v665 = vsel %vm661, %v663, %v649
    %v666 = vsel %vm662, %v664, %v656
    %vm667 = vcmp.le.s32.totalorder %v642, %v665
    %vm668 = vcmp.le.s32.totalorder %v642, %v666
    %v669 = vmul.f32 %v597, %v626
    %670 = vrot.lane.b32.xlu0 %v597, 64
    %v671 = vpop.permute.xlu0 %670
    %v672 = vmul.f32 %v671, %v627
    %v673 = vadd.f32 %v669, %v672
    %v674 = vpack.c.bf16 %v673, %v673
    %v675 = vpack.c.bf16 %v623, %v623
    %v676 = vpack.c.bf16 %v637, %v632
    %677 = vmatpush.bf16.xpose.msra.mxu0 0
    %678 = vmatpush.bf16.xpose.msra.mxu0 0
    %679 = vmatpush.bf16.xpose.msra.mxu0 0
    %680 = vmatpush.bf16.xpose.msra.mxu0 0
    %681 = vmatpush.bf16.xpose.msra.mxu0 0
    %682 = vmatpush.bf16.xpose.msra.mxu0 0
    %683 = vmatpush.bf16.xpose.msra.mxu0 0
    %684 = vmatpush.bf16.xpose.msra.mxu0 %v674
    %685 = vmatmul.bf16.gmra.mxu0 %v676
    %v686 = vpop.f32.mrf.mxu0
    %v687 = vadd.f32 0.0, %v686
    %v688 = vpop.f32.mrf.mxu0
    %v689 = vadd.f32 0.0, %v688
    %690 = vdwg.mxu0
    %v691 = vsel %vm667, %v687, -1e+30
    %v692 = vsel %vm668, %v689, -1e+30
    %vm693 = vcmask 64512
    %v694 = vsel %vm693, %v691, -inf
    %695 = vmax.xlane.f32.xlu0 %v694
    %v696 = vpop.xlane.xlu0 %695
    %v697 = vsel %vm693, %v692, -inf
    %698 = vmax.xlane.f32.xlu0 %v697
    %v699 = vpop.xlane.xlu0 %698
    %v700 = vsub.f32 %v691, %v696
    %v701 = vsub.f32 %v692, %v699
    %v702 = vmul.f32 %v700, 1.442695
    %v703 = vpow.pop %v702
    %v704 = vmul.f32 %v701, 1.442695
    %v705 = vpow.pop %v704
    %v706 = vsel %vm693, %v703, 0.0
    %707 = vadd.xlane.f32.xlu0 %v706
    %v708 = vpop.xlane.xlu0 %707
    %v709 = vsel %vm693, %v705, 0.0
    %710 = vadd.xlane.f32.xlu0 %v709
    %v711 = vpop.xlane.xlu0 %710
    %v712 = vrcp.pop %v708
    %v713 = vmul.f32 %v708, %v712
    %v714 = vsub.f32 1.0, %v713
    %v715 = vmul.f32 %v712, %v714
    %v716 = vadd.f32 %v712, %v715
    %vm717 = vweird.f32 %v708
    %vm718 = vweird.f32 %v712
    %vm719 = vmor %vm717, %vm718
    %v720 = vsel %vm719, %v712, %v716
    %v721 = vand.u32 2147483647, %v708
    %vm722 = vcmp.eq.f32.partialorder %v721, 8.507059e+37
    %v723 = vand.u32 %v708, 2147483648
    %v724 = vor.u32 1.1754944e-38, %v723
    %v725 = vsel %vm722, %v724, %v720
    %v726 = vmul.f32 %v703, %v725
    %v727 = vrcp.pop %v711
    %v728 = vmul.f32 %v711, %v727
    %v729 = vsub.f32 1.0, %v728
    %v730 = vmul.f32 %v727, %v729
    %v731 = vadd.f32 %v727, %v730
    %vm732 = vweird.f32 %v711
    %vm733 = vweird.f32 %v727
    %vm734 = vmor %vm732, %vm733
    %v735 = vsel %vm734, %v727, %v731
    %v736 = vand.u32 2147483647, %v711
    %vm737 = vcmp.eq.f32.partialorder %v736, 8.507059e+37
    %v738 = vand.u32 %v711, 2147483648
    %v739 = vor.u32 1.1754944e-38, %v738
    %v740 = vsel %vm737, %v739, %v735
    %v741 = vmul.f32 %v705, %v740
    %v742 = vpack.c.bf16 %v741, %v726
    %v744 = vsel %vm693, %v742, 0
    %vm746 = vcmask 1043456
    %v748 = vsel %vm746, %v675, 0
    %750 = vmatpush.bf16.msra.mxu0 0
    %751 = vmatpush.bf16.msra.mxu0 0
    %752 = vmatpush.bf16.msra.mxu0 0
    %753 = vmatpush.bf16.msra.mxu0 0
    %754 = vmatpush.bf16.msra.mxu0 0
    %755 = vmatpush.bf16.msra.mxu0 0
    %756 = vmatpush.bf16.msra.mxu0 0
    %757 = vmatpush.bf16.msra.mxu0 %v748
    %758 = vmatmul.bf16.gmra.mxu0 %v744
    %v759 = vpop.f32.mrf.mxu0
    %v760 = vadd.f32 0.0, %v759
    %v761 = vpop.f32.mrf.mxu0
    %v762 = vadd.f32 0.0, %v761
    %763 = vdwg.mxu0
    %v764 = vpack.c.bf16 %v760, %v760
    %v765 = vpack.c.bf16 %v762, %v762
    %v766 = vld [vmem:[#allocation5] sm:$0xff]
    %v767 = vld [vmem:[#allocation5 + $0x8] sm:$0xff]
    %v768 = vld [vmem:[#allocation5 + $0x10] sm:$0xff]
    %v769 = vld [vmem:[#allocation5 + $0x18] sm:$0xff]
    %v770 = vld [vmem:[#allocation5 + $0x20] sm:$0xff]
    %v771 = vld [vmem:[#allocation5 + $0x28] sm:$0xff]
    %v772 = vld [vmem:[#allocation5 + $0x30] sm:$0xff]
    %v773 = vld [vmem:[#allocation5 + $0x38] sm:$0xff]
    %v774 = vld [vmem:[#allocation5 + $0x40] sm:$0xff]
    %v775 = vld [vmem:[#allocation5 + $0x48] sm:$0xff]
    %v776 = vld [vmem:[#allocation5 + $0x50] sm:$0xff]
    %v777 = vld [vmem:[#allocation5 + $0x58] sm:$0xff]
    %v778 = vld [vmem:[#allocation5 + $0x60] sm:$0xff]
    %v779 = vld [vmem:[#allocation5 + $0x68] sm:$0xff]
    %v780 = vld [vmem:[#allocation5 + $0x70] sm:$0xff]
    %v781 = vld [vmem:[#allocation5 + $0x78] sm:$0xff]
    %v782 = vld [vmem:[#allocation5 + $0x80] sm:$0xff]
    %v783 = vld [vmem:[#allocation5 + $0x88] sm:$0xff]
    %v784 = vld [vmem:[#allocation5 + $0x90] sm:$0xff]
    %v785 = vld [vmem:[#allocation5 + $0x98] sm:$0xff]
    %v786 = vld [vmem:[#allocation5 + $0xa0] sm:$0xff]
    %v787 = vld [vmem:[#allocation5 + $0xa8] sm:$0xff]
    %v788 = vld [vmem:[#allocation5 + $0xb0] sm:$0xff]
    %v789 = vld [vmem:[#allocation5 + $0xb8] sm:$0xff]
    %v790 = vld [vmem:[#allocation5 + $0xc0] sm:$0xff]
    %v791 = vld [vmem:[#allocation5 + $0xc8] sm:$0xff]
    %v792 = vld [vmem:[#allocation5 + $0xd0] sm:$0xff]
    %v793 = vld [vmem:[#allocation5 + $0xd8] sm:$0xff]
    %v794 = vld [vmem:[#allocation5 + $0xe0] sm:$0xff]
    %v795 = vld [vmem:[#allocation5 + $0xe8] sm:$0xff]
    %v796 = vld [vmem:[#allocation5 + $0xf0] sm:$0xff]
    %v797 = vld [vmem:[#allocation5 + $0xf8] sm:$0xff]
    %v830 = vunpack.c.l.b16 %v766
    %v831 = vunpack.c.h.b16 %v766
    %v832 = vunpack.c.l.b16 %v767
    %v833 = vunpack.c.h.b16 %v767
    %v834 = vunpack.c.l.b16 %v768
    %v835 = vunpack.c.h.b16 %v768
    %v836 = vunpack.c.l.b16 %v769
    %v837 = vunpack.c.h.b16 %v769
    %v838 = vunpack.c.l.b16 %v770
    %v839 = vunpack.c.h.b16 %v770
    %v840 = vunpack.c.l.b16 %v771
    %v841 = vunpack.c.h.b16 %v771
    %v842 = vunpack.c.l.b16 %v772
    %v843 = vunpack.c.h.b16 %v772
    %v844 = vunpack.c.l.b16 %v773
    %v845 = vunpack.c.h.b16 %v773
    %v846 = vunpack.c.l.b16 %v774
    %v847 = vunpack.c.h.b16 %v774
    %v848 = vunpack.c.l.b16 %v775
    %v849 = vunpack.c.h.b16 %v775
    %v850 = vunpack.c.l.b16 %v776
    %v851 = vunpack.c.h.b16 %v776
    %v852 = vunpack.c.l.b16 %v777
    %v853 = vunpack.c.h.b16 %v777
    %v854 = vunpack.c.l.b16 %v778
    %v855 = vunpack.c.h.b16 %v778
    %v856 = vunpack.c.l.b16 %v779
    %v857 = vunpack.c.h.b16 %v779
    %v858 = vunpack.c.l.b16 %v780
    %v859 = vunpack.c.h.b16 %v780
    %v860 = vunpack.c.l.b16 %v781
    %v861 = vunpack.c.h.b16 %v781
    %v862 = vunpack.c.l.b16 %v782
    %v863 = vunpack.c.h.b16 %v782
    %v864 = vunpack.c.l.b16 %v783
    %v865 = vunpack.c.h.b16 %v783
    %v866 = vunpack.c.l.b16 %v784
    %v867 = vunpack.c.h.b16 %v784
    %v868 = vunpack.c.l.b16 %v785
    %v869 = vunpack.c.h.b16 %v785
    %v870 = vunpack.c.l.b16 %v786
    %v871 = vunpack.c.h.b16 %v786
    %v872 = vunpack.c.l.b16 %v787
    %v873 = vunpack.c.h.b16 %v787
    %v874 = vunpack.c.l.b16 %v788
    %v875 = vunpack.c.h.b16 %v788
    %v876 = vunpack.c.l.b16 %v789
    %v877 = vunpack.c.h.b16 %v789
    %v878 = vunpack.c.l.b16 %v790
    %v879 = vunpack.c.h.b16 %v790
    %v880 = vunpack.c.l.b16 %v791
    %v881 = vunpack.c.h.b16 %v791
    %v882 = vunpack.c.l.b16 %v792
    %v883 = vunpack.c.h.b16 %v792
    %v884 = vunpack.c.l.b16 %v793
    %v885 = vunpack.c.h.b16 %v793
    %v886 = vunpack.c.l.b16 %v794
    %v887 = vunpack.c.h.b16 %v794
    %v888 = vunpack.c.l.b16 %v795
    %v889 = vunpack.c.h.b16 %v795
    %v890 = vunpack.c.l.b16 %v796
    %v891 = vunpack.c.h.b16 %v796
    %v892 = vunpack.c.l.b16 %v797
    %v893 = vunpack.c.h.b16 %v797
    %v894 = vpack.c.b16 %v832, %v830
    %v895 = vpack.c.b16 %v833, %v831
    %v896 = vpack.c.b16 %v836, %v834
    %v897 = vpack.c.b16 %v837, %v835
    %v898 = vpack.c.b16 %v840, %v838
    %v899 = vpack.c.b16 %v841, %v839
    %v900 = vpack.c.b16 %v844, %v842
    %v901 = vpack.c.b16 %v845, %v843
    %v902 = vpack.c.b16 %v848, %v846
    %v903 = vpack.c.b16 %v849, %v847
    %v904 = vpack.c.b16 %v852, %v850
    %v905 = vpack.c.b16 %v853, %v851
    %v906 = vpack.c.b16 %v856, %v854
    %v907 = vpack.c.b16 %v857, %v855
    %v908 = vpack.c.b16 %v860, %v858
    %v909 = vpack.c.b16 %v861, %v859
    %v910 = vpack.c.b16 %v864, %v862
    %v911 = vpack.c.b16 %v865, %v863
    %v912 = vpack.c.b16 %v868, %v866
    %v913 = vpack.c.b16 %v869, %v867
    %v914 = vpack.c.b16 %v872, %v870
    %v915 = vpack.c.b16 %v873, %v871
    %v916 = vpack.c.b16 %v876, %v874
    %v917 = vpack.c.b16 %v877, %v875
    %v918 = vpack.c.b16 %v880, %v878
    %v919 = vpack.c.b16 %v881, %v879
    %v920 = vpack.c.b16 %v884, %v882
    %v921 = vpack.c.b16 %v885, %v883
    %v922 = vpack.c.b16 %v888, %v886
    %v923 = vpack.c.b16 %v889, %v887
    %v924 = vpack.c.b16 %v892, %v890
    %v925 = vpack.c.b16 %v893, %v891
    %958 = vmatpush.bf16.msra.mxu0 %v908
    %959 = vmatpush.bf16.msra.mxu0 %v906
    %960 = vmatpush.bf16.msra.mxu0 %v904
    %961 = vmatpush.bf16.msra.mxu0 %v902
    %962 = vmatpush.bf16.msra.mxu0 %v900
    %963 = vmatpush.bf16.msra.mxu0 %v898
    %964 = vmatpush.bf16.msra.mxu0 %v896
    %965 = vmatpush.bf16.msra.mxu0 %v894
    %966 = vmatmul.bf16.gmra.mxu0 %v764
    %v967 = vpop.f32.mrf.mxu0
    %v968 = vadd.f32 %v100, %v967
    %v969 = vpop.f32.mrf.mxu0
    %970 = vdwg.mxu0
    %971 = vmatpush.bf16.msra.mxu0 %v924
    %972 = vmatpush.bf16.msra.mxu0 %v922
    %973 = vmatpush.bf16.msra.mxu0 %v920
    %974 = vmatpush.bf16.msra.mxu0 %v918
    %975 = vmatpush.bf16.msra.mxu0 %v916
    %976 = vmatpush.bf16.msra.mxu0 %v914
    %977 = vmatpush.bf16.msra.mxu0 %v912
    %978 = vmatpush.bf16.msra.mxu0 %v910
    %979 = vmatmul.bf16.gmra.mxu0 %v765
    %v980 = vpop.f32.mrf.mxu0
    %v981 = vadd.f32 %v968, %v980
    %v982 = vpop.f32.mrf.mxu0
    %983 = vdwg.mxu0
    %984 = vmatpush.bf16.msra.mxu0 %v909
    %985 = vmatpush.bf16.msra.mxu0 %v907
    %986 = vmatpush.bf16.msra.mxu0 %v905
    %987 = vmatpush.bf16.msra.mxu0 %v903
    %988 = vmatpush.bf16.msra.mxu0 %v901
    %989 = vmatpush.bf16.msra.mxu0 %v899
    %990 = vmatpush.bf16.msra.mxu0 %v897
    %991 = vmatpush.bf16.msra.mxu0 %v895
    %992 = vmatmul.bf16.gmra.mxu0 %v764
    %v993 = vpop.f32.mrf.mxu0
    %v994 = vadd.f32 %v101, %v993
    %v995 = vpop.f32.mrf.mxu0
    %996 = vdwg.mxu0
    %997 = vmatpush.bf16.msra.mxu0 %v925
    %998 = vmatpush.bf16.msra.mxu0 %v923
    %999 = vmatpush.bf16.msra.mxu0 %v921
    %1000 = vmatpush.bf16.msra.mxu0 %v919
    %1001 = vmatpush.bf16.msra.mxu0 %v917
    %1002 = vmatpush.bf16.msra.mxu0 %v915
    %1003 = vmatpush.bf16.msra.mxu0 %v913
    %1004 = vmatpush.bf16.msra.mxu0 %v911
    %1005 = vmatmul.bf16.gmra.mxu0 %v765
    %v1006 = vpop.f32.mrf.mxu0
    %v1007 = vadd.f32 %v994, %v1006
    %v1008 = vpop.f32.mrf.mxu0
    %1009 = vdwg.mxu0
    %1010 = vst [vmem:[#allocation11] sm:$0xff] %v981
    %1011 = vst [vmem:[#allocation11 + $0x8] sm:$0xff] %v1007
    %v1012 = vld [vmem:[%s6] sm:$0x3]
    %v1013 = vmul.f32 %v981, %v981
    %v1014 = vmul.f32 %v1007, %v1007
    %v1015 = vadd.f32 %v1013, %v1014
    %1016 = vadd.xlane.f32.xlu0 %v1015
    %v1017 = vpop.xlane.xlu0 %1016
    %v1018 = vmul.f32 %v1017, %v114
    %v1019 = vadd.f32 %v1018, 1e-06
    %v1020 = vrsqrt.pop %v1019
    %v1021 = vmul.f32 %v1020, %v1019
    %v1022 = vmul.f32 %v1021, %v1020
    %v1023 = vmul.f32 0.5, %v1022
    %v1024 = vsub.f32 1.5, %v1023
    %v1025 = vmul.f32 %v1020, %v1024
    %vm1026 = vweird.f32 %v1019
    %vm1027 = vweird.f32 %v1020
    %vm1028 = vmor %vm1026, %vm1027
    %v1029 = vsel %vm1028, %v1020, %v1025
    %v1030 = vmul.f32 %v981, %v1029
    %v1031 = vmul.f32 %v1007, %v1029
    %v1033 = vperm.slane %v1012, 0
    %v1034 = vperm.slane %v1012, 1
    %v1037 = vmul.f32 %v1030, %v1033
    %v1038 = vmul.f32 %v1031, %v1034
    %v1039 = vpack.c.bf16 %v1037, %v1037
    %v1040 = vpack.c.bf16 %v1038, %v1038
    %v1041 = vld [vmem:[#allocation7] sm:$0xff]
    %v1042 = vld [vmem:[#allocation7 + $0x8] sm:$0xff]
    %v1043 = vld [vmem:[#allocation7 + $0x10] sm:$0xff]
    %v1044 = vld [vmem:[#allocation7 + $0x18] sm:$0xff]
    %v1045 = vld [vmem:[#allocation7 + $0x20] sm:$0xff]
    %v1046 = vld [vmem:[#allocation7 + $0x28] sm:$0xff]
    %v1047 = vld [vmem:[#allocation7 + $0x30] sm:$0xff]
    %v1048 = vld [vmem:[#allocation7 + $0x38] sm:$0xff]
    %v1049 = vld [vmem:[#allocation7 + $0x40] sm:$0xff]
    %v1050 = vld [vmem:[#allocation7 + $0x48] sm:$0xff]
    %v1051 = vld [vmem:[#allocation7 + $0x50] sm:$0xff]
    %v1052 = vld [vmem:[#allocation7 + $0x58] sm:$0xff]
    %v1053 = vld [vmem:[#allocation7 + $0x60] sm:$0xff]
    %v1054 = vld [vmem:[#allocation7 + $0x68] sm:$0xff]
    %v1055 = vld [vmem:[#allocation7 + $0x70] sm:$0xff]
    %v1056 = vld [vmem:[#allocation7 + $0x78] sm:$0xff]
    %v1057 = vld [vmem:[#allocation7 + $0x80] sm:$0xff]
    %v1058 = vld [vmem:[#allocation7 + $0x88] sm:$0xff]
    %v1059 = vld [vmem:[#allocation7 + $0x90] sm:$0xff]
    %v1060 = vld [vmem:[#allocation7 + $0x98] sm:$0xff]
    %v1061 = vld [vmem:[#allocation7 + $0xa0] sm:$0xff]
    %v1062 = vld [vmem:[#allocation7 + $0xa8] sm:$0xff]
    %v1063 = vld [vmem:[#allocation7 + $0xb0] sm:$0xff]
    %v1064 = vld [vmem:[#allocation7 + $0xb8] sm:$0xff]
    %v1065 = vld [vmem:[#allocation7 + $0xc0] sm:$0xff]
    %v1066 = vld [vmem:[#allocation7 + $0xc8] sm:$0xff]
    %v1067 = vld [vmem:[#allocation7 + $0xd0] sm:$0xff]
    %v1068 = vld [vmem:[#allocation7 + $0xd8] sm:$0xff]
    %v1069 = vld [vmem:[#allocation7 + $0xe0] sm:$0xff]
    %v1070 = vld [vmem:[#allocation7 + $0xe8] sm:$0xff]
    %v1071 = vld [vmem:[#allocation7 + $0xf0] sm:$0xff]
    %v1072 = vld [vmem:[#allocation7 + $0xf8] sm:$0xff]
    %v1073 = vld [vmem:[#allocation7 + $0x100] sm:$0xff]
    %v1074 = vld [vmem:[#allocation7 + $0x108] sm:$0xff]
    %v1075 = vld [vmem:[#allocation7 + $0x110] sm:$0xff]
    %v1076 = vld [vmem:[#allocation7 + $0x118] sm:$0xff]
    %v1077 = vld [vmem:[#allocation7 + $0x120] sm:$0xff]
    %v1078 = vld [vmem:[#allocation7 + $0x128] sm:$0xff]
    %v1079 = vld [vmem:[#allocation7 + $0x130] sm:$0xff]
    %v1080 = vld [vmem:[#allocation7 + $0x138] sm:$0xff]
    %v1081 = vld [vmem:[#allocation7 + $0x140] sm:$0xff]
    %v1082 = vld [vmem:[#allocation7 + $0x148] sm:$0xff]
    %v1083 = vld [vmem:[#allocation7 + $0x150] sm:$0xff]
    %v1084 = vld [vmem:[#allocation7 + $0x158] sm:$0xff]
    %v1085 = vld [vmem:[#allocation7 + $0x160] sm:$0xff]
    %v1086 = vld [vmem:[#allocation7 + $0x168] sm:$0xff]
    %v1087 = vld [vmem:[#allocation7 + $0x170] sm:$0xff]
    %v1088 = vld [vmem:[#allocation7 + $0x178] sm:$0xff]
    %v1089 = vld [vmem:[#allocation7 + $0x180] sm:$0xff]
    %v1090 = vld [vmem:[#allocation7 + $0x188] sm:$0xff]
    %v1091 = vld [vmem:[#allocation7 + $0x190] sm:$0xff]
    %v1092 = vld [vmem:[#allocation7 + $0x198] sm:$0xff]
    %v1093 = vld [vmem:[#allocation7 + $0x1a0] sm:$0xff]
    %v1094 = vld [vmem:[#allocation7 + $0x1a8] sm:$0xff]
    %v1095 = vld [vmem:[#allocation7 + $0x1b0] sm:$0xff]
    %v1096 = vld [vmem:[#allocation7 + $0x1b8] sm:$0xff]
    %v1097 = vld [vmem:[#allocation7 + $0x1c0] sm:$0xff]
    %v1098 = vld [vmem:[#allocation7 + $0x1c8] sm:$0xff]
    %v1099 = vld [vmem:[#allocation7 + $0x1d0] sm:$0xff]
    %v1100 = vld [vmem:[#allocation7 + $0x1d8] sm:$0xff]
    %v1101 = vld [vmem:[#allocation7 + $0x1e0] sm:$0xff]
    %v1102 = vld [vmem:[#allocation7 + $0x1e8] sm:$0xff]
    %v1103 = vld [vmem:[#allocation7 + $0x1f0] sm:$0xff]
    %v1104 = vld [vmem:[#allocation7 + $0x1f8] sm:$0xff]
    %v1105 = vld [vmem:[#allocation7 + $0x200] sm:$0xff]
    %v1106 = vld [vmem:[#allocation7 + $0x208] sm:$0xff]
    %v1107 = vld [vmem:[#allocation7 + $0x210] sm:$0xff]
    %v1108 = vld [vmem:[#allocation7 + $0x218] sm:$0xff]
    %v1109 = vld [vmem:[#allocation7 + $0x220] sm:$0xff]
    %v1110 = vld [vmem:[#allocation7 + $0x228] sm:$0xff]
    %v1111 = vld [vmem:[#allocation7 + $0x230] sm:$0xff]
    %v1112 = vld [vmem:[#allocation7 + $0x238] sm:$0xff]
    %v1113 = vld [vmem:[#allocation7 + $0x240] sm:$0xff]
    %v1114 = vld [vmem:[#allocation7 + $0x248] sm:$0xff]
    %v1115 = vld [vmem:[#allocation7 + $0x250] sm:$0xff]
    %v1116 = vld [vmem:[#allocation7 + $0x258] sm:$0xff]
    %v1117 = vld [vmem:[#allocation7 + $0x260] sm:$0xff]
    %v1118 = vld [vmem:[#allocation7 + $0x268] sm:$0xff]
    %v1119 = vld [vmem:[#allocation7 + $0x270] sm:$0xff]
    %v1120 = vld [vmem:[#allocation7 + $0x278] sm:$0xff]
    %v1121 = vld [vmem:[#allocation7 + $0x280] sm:$0xff]
    %v1122 = vld [vmem:[#allocation7 + $0x288] sm:$0xff]
    %v1123 = vld [vmem:[#allocation7 + $0x290] sm:$0xff]
    %v1124 = vld [vmem:[#allocation7 + $0x298] sm:$0xff]
    %v1125 = vld [vmem:[#allocation7 + $0x2a0] sm:$0xff]
    %v1126 = vld [vmem:[#allocation7 + $0x2a8] sm:$0xff]
    %v1127 = vld [vmem:[#allocation7 + $0x2b0] sm:$0xff]
    %v1128 = vld [vmem:[#allocation7 + $0x2b8] sm:$0xff]
    %v1129 = vld [vmem:[#allocation7 + $0x2c0] sm:$0xff]
    %v1130 = vld [vmem:[#allocation7 + $0x2c8] sm:$0xff]
    %v1131 = vld [vmem:[#allocation7 + $0x2d0] sm:$0xff]
    %v1132 = vld [vmem:[#allocation7 + $0x2d8] sm:$0xff]
    %v1133 = vld [vmem:[#allocation7 + $0x2e0] sm:$0xff]
    %v1134 = vld [vmem:[#allocation7 + $0x2e8] sm:$0xff]
    %v1135 = vld [vmem:[#allocation7 + $0x2f0] sm:$0xff]
    %v1136 = vld [vmem:[#allocation7 + $0x2f8] sm:$0xff]
    %v1137 = vld [vmem:[#allocation7 + $0x300] sm:$0xff]
    %v1138 = vld [vmem:[#allocation7 + $0x308] sm:$0xff]
    %v1139 = vld [vmem:[#allocation7 + $0x310] sm:$0xff]
    %v1140 = vld [vmem:[#allocation7 + $0x318] sm:$0xff]
    %v1141 = vld [vmem:[#allocation7 + $0x320] sm:$0xff]
    %v1142 = vld [vmem:[#allocation7 + $0x328] sm:$0xff]
    %v1143 = vld [vmem:[#allocation7 + $0x330] sm:$0xff]
    %v1144 = vld [vmem:[#allocation7 + $0x338] sm:$0xff]
    %v1145 = vld [vmem:[#allocation7 + $0x340] sm:$0xff]
    %v1146 = vld [vmem:[#allocation7 + $0x348] sm:$0xff]
    %v1147 = vld [vmem:[#allocation7 + $0x350] sm:$0xff]
    %v1148 = vld [vmem:[#allocation7 + $0x358] sm:$0xff]
    %v1149 = vld [vmem:[#allocation7 + $0x360] sm:$0xff]
    %v1150 = vld [vmem:[#allocation7 + $0x368] sm:$0xff]
    %v1151 = vld [vmem:[#allocation7 + $0x370] sm:$0xff]
    %v1152 = vld [vmem:[#allocation7 + $0x378] sm:$0xff]
    %v1153 = vld [vmem:[#allocation7 + $0x380] sm:$0xff]
    %v1154 = vld [vmem:[#allocation7 + $0x388] sm:$0xff]
    %v1155 = vld [vmem:[#allocation7 + $0x390] sm:$0xff]
    %v1156 = vld [vmem:[#allocation7 + $0x398] sm:$0xff]
    %v1157 = vld [vmem:[#allocation7 + $0x3a0] sm:$0xff]
    %v1158 = vld [vmem:[#allocation7 + $0x3a8] sm:$0xff]
    %v1159 = vld [vmem:[#allocation7 + $0x3b0] sm:$0xff]
    %v1160 = vld [vmem:[#allocation7 + $0x3b8] sm:$0xff]
    %v1161 = vld [vmem:[#allocation7 + $0x3c0] sm:$0xff]
    %v1162 = vld [vmem:[#allocation7 + $0x3c8] sm:$0xff]
    %v1163 = vld [vmem:[#allocation7 + $0x3d0] sm:$0xff]
    %v1164 = vld [vmem:[#allocation7 + $0x3d8] sm:$0xff]
    %v1165 = vld [vmem:[#allocation7 + $0x3e0] sm:$0xff]
    %v1166 = vld [vmem:[#allocation7 + $0x3e8] sm:$0xff]
    %v1167 = vld [vmem:[#allocation7 + $0x3f0] sm:$0xff]
    %v1168 = vld [vmem:[#allocation7 + $0x3f8] sm:$0xff]
    %v1297 = vunpack.c.l.b16 %v1041
    %v1298 = vunpack.c.h.b16 %v1041
    %v1299 = vunpack.c.l.b16 %v1042
    %v1300 = vunpack.c.h.b16 %v1042
    %v1301 = vunpack.c.l.b16 %v1043
    %v1302 = vunpack.c.h.b16 %v1043
    %v1303 = vunpack.c.l.b16 %v1044
    %v1304 = vunpack.c.h.b16 %v1044
    %v1305 = vunpack.c.l.b16 %v1045
    %v1306 = vunpack.c.h.b16 %v1045
    %v1307 = vunpack.c.l.b16 %v1046
    %v1308 = vunpack.c.h.b16 %v1046
    %v1309 = vunpack.c.l.b16 %v1047
    %v1310 = vunpack.c.h.b16 %v1047
    %v1311 = vunpack.c.l.b16 %v1048
    %v1312 = vunpack.c.h.b16 %v1048
    %v1313 = vunpack.c.l.b16 %v1049
    %v1314 = vunpack.c.h.b16 %v1049
    %v1315 = vunpack.c.l.b16 %v1050
    %v1316 = vunpack.c.h.b16 %v1050
    %v1317 = vunpack.c.l.b16 %v1051
    %v1318 = vunpack.c.h.b16 %v1051
    %v1319 = vunpack.c.l.b16 %v1052
    %v1320 = vunpack.c.h.b16 %v1052
    %v1321 = vunpack.c.l.b16 %v1053
    %v1322 = vunpack.c.h.b16 %v1053
    %v1323 = vunpack.c.l.b16 %v1054
    %v1324 = vunpack.c.h.b16 %v1054
    %v1325 = vunpack.c.l.b16 %v1055
    %v1326 = vunpack.c.h.b16 %v1055
    %v1327 = vunpack.c.l.b16 %v1056
    %v1328 = vunpack.c.h.b16 %v1056
    %v1329 = vunpack.c.l.b16 %v1057
    %v1330 = vunpack.c.h.b16 %v1057
    %v1331 = vunpack.c.l.b16 %v1058
    %v1332 = vunpack.c.h.b16 %v1058
    %v1333 = vunpack.c.l.b16 %v1059
    %v1334 = vunpack.c.h.b16 %v1059
    %v1335 = vunpack.c.l.b16 %v1060
    %v1336 = vunpack.c.h.b16 %v1060
    %v1337 = vunpack.c.l.b16 %v1061
    %v1338 = vunpack.c.h.b16 %v1061
    %v1339 = vunpack.c.l.b16 %v1062
    %v1340 = vunpack.c.h.b16 %v1062
    %v1341 = vunpack.c.l.b16 %v1063
    %v1342 = vunpack.c.h.b16 %v1063
    %v1343 = vunpack.c.l.b16 %v1064
    %v1344 = vunpack.c.h.b16 %v1064
    %v1345 = vunpack.c.l.b16 %v1065
    %v1346 = vunpack.c.h.b16 %v1065
    %v1347 = vunpack.c.l.b16 %v1066
    %v1348 = vunpack.c.h.b16 %v1066
    %v1349 = vunpack.c.l.b16 %v1067
    %v1350 = vunpack.c.h.b16 %v1067
    %v1351 = vunpack.c.l.b16 %v1068
    %v1352 = vunpack.c.h.b16 %v1068
    %v1353 = vunpack.c.l.b16 %v1069
    %v1354 = vunpack.c.h.b16 %v1069
    %v1355 = vunpack.c.l.b16 %v1070
    %v1356 = vunpack.c.h.b16 %v1070
    %v1357 = vunpack.c.l.b16 %v1071
    %v1358 = vunpack.c.h.b16 %v1071
    %v1359 = vunpack.c.l.b16 %v1072
    %v1360 = vunpack.c.h.b16 %v1072
    %v1361 = vunpack.c.l.b16 %v1073
    %v1362 = vunpack.c.h.b16 %v1073
    %v1363 = vunpack.c.l.b16 %v1074
    %v1364 = vunpack.c.h.b16 %v1074
    %v1365 = vunpack.c.l.b16 %v1075
    %v1366 = vunpack.c.h.b16 %v1075
    %v1367 = vunpack.c.l.b16 %v1076
    %v1368 = vunpack.c.h.b16 %v1076
    %v1369 = vunpack.c.l.b16 %v1077
    %v1370 = vunpack.c.h.b16 %v1077
    %v1371 = vunpack.c.l.b16 %v1078
    %v1372 = vunpack.c.h.b16 %v1078
    %v1373 = vunpack.c.l.b16 %v1079
    %v1374 = vunpack.c.h.b16 %v1079
    %v1375 = vunpack.c.l.b16 %v1080
    %v1376 = vunpack.c.h.b16 %v1080
    %v1377 = vunpack.c.l.b16 %v1081
    %v1378 = vunpack.c.h.b16 %v1081
    %v1379 = vunpack.c.l.b16 %v1082
    %v1380 = vunpack.c.h.b16 %v1082
    %v1381 = vunpack.c.l.b16 %v1083
    %v1382 = vunpack.c.h.b16 %v1083
    %v1383 = vunpack.c.l.b16 %v1084
    %v1384 = vunpack.c.h.b16 %v1084
    %v1385 = vunpack.c.l.b16 %v1085
    %v1386 = vunpack.c.h.b16 %v1085
    %v1387 = vunpack.c.l.b16 %v1086
    %v1388 = vunpack.c.h.b16 %v1086
    %v1389 = vunpack.c.l.b16 %v1087
    %v1390 = vunpack.c.h.b16 %v1087
    %v1391 = vunpack.c.l.b16 %v1088
    %v1392 = vunpack.c.h.b16 %v1088
    %v1393 = vunpack.c.l.b16 %v1089
    %v1394 = vunpack.c.h.b16 %v1089
    %v1395 = vunpack.c.l.b16 %v1090
    %v1396 = vunpack.c.h.b16 %v1090
    %v1397 = vunpack.c.l.b16 %v1091
    %v1398 = vunpack.c.h.b16 %v1091
    %v1399 = vunpack.c.l.b16 %v1092
    %v1400 = vunpack.c.h.b16 %v1092
    %v1401 = vunpack.c.l.b16 %v1093
    %v1402 = vunpack.c.h.b16 %v1093
    %v1403 = vunpack.c.l.b16 %v1094
    %v1404 = vunpack.c.h.b16 %v1094
    %v1405 = vunpack.c.l.b16 %v1095
    %v1406 = vunpack.c.h.b16 %v1095
    %v1407 = vunpack.c.l.b16 %v1096
    %v1408 = vunpack.c.h.b16 %v1096
    %v1409 = vunpack.c.l.b16 %v1097
    %v1410 = vunpack.c.h.b16 %v1097
    %v1411 = vunpack.c.l.b16 %v1098
    %v1412 = vunpack.c.h.b16 %v1098
    %v1413 = vunpack.c.l.b16 %v1099
    %v1414 = vunpack.c.h.b16 %v1099
    %v1415 = vunpack.c.l.b16 %v1100
    %v1416 = vunpack.c.h.b16 %v1100
    %v1417 = vunpack.c.l.b16 %v1101
    %v1418 = vunpack.c.h.b16 %v1101
    %v1419 = vunpack.c.l.b16 %v1102
    %v1420 = vunpack.c.h.b16 %v1102
    %v1421 = vunpack.c.l.b16 %v1103
    %v1422 = vunpack.c.h.b16 %v1103
    %v1423 = vunpack.c.l.b16 %v1104
    %v1424 = vunpack.c.h.b16 %v1104
    %v1425 = vunpack.c.l.b16 %v1105
    %v1426 = vunpack.c.h.b16 %v1105
    %v1427 = vunpack.c.l.b16 %v1106
    %v1428 = vunpack.c.h.b16 %v1106
    %v1429 = vunpack.c.l.b16 %v1107
    %v1430 = vunpack.c.h.b16 %v1107
    %v1431 = vunpack.c.l.b16 %v1108
    %v1432 = vunpack.c.h.b16 %v1108
    %v1433 = vunpack.c.l.b16 %v1109
    %v1434 = vunpack.c.h.b16 %v1109
    %v1435 = vunpack.c.l.b16 %v1110
    %v1436 = vunpack.c.h.b16 %v1110
    %v1437 = vunpack.c.l.b16 %v1111
    %v1438 = vunpack.c.h.b16 %v1111
    %v1439 = vunpack.c.l.b16 %v1112
    %v1440 = vunpack.c.h.b16 %v1112
    %v1441 = vunpack.c.l.b16 %v1113
    %v1442 = vunpack.c.h.b16 %v1113
    %v1443 = vunpack.c.l.b16 %v1114
    %v1444 = vunpack.c.h.b16 %v1114
    %v1445 = vunpack.c.l.b16 %v1115
    %v1446 = vunpack.c.h.b16 %v1115
    %v1447 = vunpack.c.l.b16 %v1116
    %v1448 = vunpack.c.h.b16 %v1116
    %v1449 = vunpack.c.l.b16 %v1117
    %v1450 = vunpack.c.h.b16 %v1117
    %v1451 = vunpack.c.l.b16 %v1118
    %v1452 = vunpack.c.h.b16 %v1118
    %v1453 = vunpack.c.l.b16 %v1119
    %v1454 = vunpack.c.h.b16 %v1119
    %v1455 = vunpack.c.l.b16 %v1120
    %v1456 = vunpack.c.h.b16 %v1120
    %v1457 = vunpack.c.l.b16 %v1121
    %v1458 = vunpack.c.h.b16 %v1121
    %v1459 = vunpack.c.l.b16 %v1122
    %v1460 = vunpack.c.h.b16 %v1122
    %v1461 = vunpack.c.l.b16 %v1123
    %v1462 = vunpack.c.h.b16 %v1123
    %v1463 = vunpack.c.l.b16 %v1124
    %v1464 = vunpack.c.h.b16 %v1124
    %v1465 = vunpack.c.l.b16 %v1125
    %v1466 = vunpack.c.h.b16 %v1125
    %v1467 = vunpack.c.l.b16 %v1126
    %v1468 = vunpack.c.h.b16 %v1126
    %v1469 = vunpack.c.l.b16 %v1127
    %v1470 = vunpack.c.h.b16 %v1127
    %v1471 = vunpack.c.l.b16 %v1128
    %v1472 = vunpack.c.h.b16 %v1128
    %v1473 = vunpack.c.l.b16 %v1129
    %v1474 = vunpack.c.h.b16 %v1129
    %v1475 = vunpack.c.l.b16 %v1130
    %v1476 = vunpack.c.h.b16 %v1130
    %v1477 = vunpack.c.l.b16 %v1131
    %v1478 = vunpack.c.h.b16 %v1131
    %v1479 = vunpack.c.l.b16 %v1132
    %v1480 = vunpack.c.h.b16 %v1132
    %v1481 = vunpack.c.l.b16 %v1133
    %v1482 = vunpack.c.h.b16 %v1133
    %v1483 = vunpack.c.l.b16 %v1134
    %v1484 = vunpack.c.h.b16 %v1134
    %v1485 = vunpack.c.l.b16 %v1135
    %v1486 = vunpack.c.h.b16 %v1135
    %v1487 = vunpack.c.l.b16 %v1136
    %v1488 = vunpack.c.h.b16 %v1136
    %v1489 = vunpack.c.l.b16 %v1137
    %v1490 = vunpack.c.h.b16 %v1137
    %v1491 = vunpack.c.l.b16 %v1138
    %v1492 = vunpack.c.h.b16 %v1138
    %v1493 = vunpack.c.l.b16 %v1139
    %v1494 = vunpack.c.h.b16 %v1139
    %v1495 = vunpack.c.l.b16 %v1140
    %v1496 = vunpack.c.h.b16 %v1140
    %v1497 = vunpack.c.l.b16 %v1141
    %v1498 = vunpack.c.h.b16 %v1141
    %v1499 = vunpack.c.l.b16 %v1142
    %v1500 = vunpack.c.h.b16 %v1142
    %v1501 = vunpack.c.l.b16 %v1143
    %v1502 = vunpack.c.h.b16 %v1143
    %v1503 = vunpack.c.l.b16 %v1144
    %v1504 = vunpack.c.h.b16 %v1144
    %v1505 = vunpack.c.l.b16 %v1145
    %v1506 = vunpack.c.h.b16 %v1145
    %v1507 = vunpack.c.l.b16 %v1146
    %v1508 = vunpack.c.h.b16 %v1146
    %v1509 = vunpack.c.l.b16 %v1147
    %v1510 = vunpack.c.h.b16 %v1147
    %v1511 = vunpack.c.l.b16 %v1148
    %v1512 = vunpack.c.h.b16 %v1148
    %v1513 = vunpack.c.l.b16 %v1149
    %v1514 = vunpack.c.h.b16 %v1149
    %v1515 = vunpack.c.l.b16 %v1150
    %v1516 = vunpack.c.h.b16 %v1150
    %v1517 = vunpack.c.l.b16 %v1151
    %v1518 = vunpack.c.h.b16 %v1151
    %v1519 = vunpack.c.l.b16 %v1152
    %v1520 = vunpack.c.h.b16 %v1152
    %v1521 = vunpack.c.l.b16 %v1153
    %v1522 = vunpack.c.h.b16 %v1153
    %v1523 = vunpack.c.l.b16 %v1154
    %v1524 = vunpack.c.h.b16 %v1154
    %v1525 = vunpack.c.l.b16 %v1155
    %v1526 = vunpack.c.h.b16 %v1155
    %v1527 = vunpack.c.l.b16 %v1156
    %v1528 = vunpack.c.h.b16 %v1156
    %v1529 = vunpack.c.l.b16 %v1157
    %v1530 = vunpack.c.h.b16 %v1157
    %v1531 = vunpack.c.l.b16 %v1158
    %v1532 = vunpack.c.h.b16 %v1158
    %v1533 = vunpack.c.l.b16 %v1159
    %v1534 = vunpack.c.h.b16 %v1159
    %v1535 = vunpack.c.l.b16 %v1160
    %v1536 = vunpack.c.h.b16 %v1160
    %v1537 = vunpack.c.l.b16 %v1161
    %v1538 = vunpack.c.h.b16 %v1161
    %v1539 = vunpack.c.l.b16 %v1162
    %v1540 = vunpack.c.h.b16 %v1162
    %v1541 = vunpack.c.l.b16 %v1163
    %v1542 = vunpack.c.h.b16 %v1163
    %v1543 = vunpack.c.l.b16 %v1164
    %v1544 = vunpack.c.h.b16 %v1164
    %v1545 = vunpack.c.l.b16 %v1165
    %v1546 = vunpack.c.h.b16 %v1165
    %v1547 = vunpack.c.l.b16 %v1166
    %v1548 = vunpack.c.h.b16 %v1166
    %v1549 = vunpack.c.l.b16 %v1167
    %v1550 = vunpack.c.h.b16 %v1167
    %v1551 = vunpack.c.l.b16 %v1168
    %v1552 = vunpack.c.h.b16 %v1168
    %v1553 = vpack.c.b16 %v1305, %v1297
    %v1554 = vpack.c.b16 %v1306, %v1298
    %v1555 = vpack.c.b16 %v1307, %v1299
    %v1556 = vpack.c.b16 %v1308, %v1300
    %v1557 = vpack.c.b16 %v1309, %v1301
    %v1558 = vpack.c.b16 %v1310, %v1302
    %v1559 = vpack.c.b16 %v1311, %v1303
    %v1560 = vpack.c.b16 %v1312, %v1304
    %v1561 = vpack.c.b16 %v1321, %v1313
    %v1562 = vpack.c.b16 %v1322, %v1314
    %v1563 = vpack.c.b16 %v1323, %v1315
    %v1564 = vpack.c.b16 %v1324, %v1316
    %v1565 = vpack.c.b16 %v1325, %v1317
    %v1566 = vpack.c.b16 %v1326, %v1318
    %v1567 = vpack.c.b16 %v1327, %v1319
    %v1568 = vpack.c.b16 %v1328, %v1320
    %v1569 = vpack.c.b16 %v1337, %v1329
    %v1570 = vpack.c.b16 %v1338, %v1330
    %v1571 = vpack.c.b16 %v1339, %v1331
    %v1572 = vpack.c.b16 %v1340, %v1332
    %v1573 = vpack.c.b16 %v1341, %v1333
    %v1574 = vpack.c.b16 %v1342, %v1334
    %v1575 = vpack.c.b16 %v1343, %v1335
    %v1576 = vpack.c.b16 %v1344, %v1336
    %v1577 = vpack.c.b16 %v1353, %v1345
    %v1578 = vpack.c.b16 %v1354, %v1346
    %v1579 = vpack.c.b16 %v1355, %v1347
    %v1580 = vpack.c.b16 %v1356, %v1348
    %v1581 = vpack.c.b16 %v1357, %v1349
    %v1582 = vpack.c.b16 %v1358, %v1350
    %v1583 = vpack.c.b16 %v1359, %v1351
    %v1584 = vpack.c.b16 %v1360, %v1352
    %v1585 = vpack.c.b16 %v1369, %v1361
    %v1586 = vpack.c.b16 %v1370, %v1362
    %v1587 = vpack.c.b16 %v1371, %v1363
    %v1588 = vpack.c.b16 %v1372, %v1364
    %v1589 = vpack.c.b16 %v1373, %v1365
    %v1590 = vpack.c.b16 %v1374, %v1366
    %v1591 = vpack.c.b16 %v1375, %v1367
    %v1592 = vpack.c.b16 %v1376, %v1368
    %v1593 = vpack.c.b16 %v1385, %v1377
    %v1594 = vpack.c.b16 %v1386, %v1378
    %v1595 = vpack.c.b16 %v1387, %v1379
    %v1596 = vpack.c.b16 %v1388, %v1380
    %v1597 = vpack.c.b16 %v1389, %v1381
    %v1598 = vpack.c.b16 %v1390, %v1382
    %v1599 = vpack.c.b16 %v1391, %v1383
    %v1600 = vpack.c.b16 %v1392, %v1384
    %v1601 = vpack.c.b16 %v1401, %v1393
    %v1602 = vpack.c.b16 %v1402, %v1394
    %v1603 = vpack.c.b16 %v1403, %v1395
    %v1604 = vpack.c.b16 %v1404, %v1396
    %v1605 = vpack.c.b16 %v1405, %v1397
    %v1606 = vpack.c.b16 %v1406, %v1398
    %v1607 = vpack.c.b16 %v1407, %v1399
    %v1608 = vpack.c.b16 %v1408, %v1400
    %v1609 = vpack.c.b16 %v1417, %v1409
    %v1610 = vpack.c.b16 %v1418, %v1410
    %v1611 = vpack.c.b16 %v1419, %v1411
    %v1612 = vpack.c.b16 %v1420, %v1412
    %v1613 = vpack.c.b16 %v1421, %v1413
    %v1614 = vpack.c.b16 %v1422, %v1414
    %v1615 = vpack.c.b16 %v1423, %v1415
    %v1616 = vpack.c.b16 %v1424, %v1416
    %v1617 = vpack.c.b16 %v1433, %v1425
    %v1618 = vpack.c.b16 %v1434, %v1426
    %v1619 = vpack.c.b16 %v1435, %v1427
    %v1620 = vpack.c.b16 %v1436, %v1428
    %v1621 = vpack.c.b16 %v1437, %v1429
    %v1622 = vpack.c.b16 %v1438, %v1430
    %v1623 = vpack.c.b16 %v1439, %v1431
    %v1624 = vpack.c.b16 %v1440, %v1432
    %v1625 = vpack.c.b16 %v1449, %v1441
    %v1626 = vpack.c.b16 %v1450, %v1442
    %v1627 = vpack.c.b16 %v1451, %v1443
    %v1628 = vpack.c.b16 %v1452, %v1444
    %v1629 = vpack.c.b16 %v1453, %v1445
    %v1630 = vpack.c.b16 %v1454, %v1446
    %v1631 = vpack.c.b16 %v1455, %v1447
    %v1632 = vpack.c.b16 %v1456, %v1448
    %v1633 = vpack.c.b16 %v1465, %v1457
    %v1634 = vpack.c.b16 %v1466, %v1458
    %v1635 = vpack.c.b16 %v1467, %v1459
    %v1636 = vpack.c.b16 %v1468, %v1460
    %v1637 = vpack.c.b16 %v1469, %v1461
    %v1638 = vpack.c.b16 %v1470, %v1462
    %v1639 = vpack.c.b16 %v1471, %v1463
    %v1640 = vpack.c.b16 %v1472, %v1464
    %v1641 = vpack.c.b16 %v1481, %v1473
    %v1642 = vpack.c.b16 %v1482, %v1474
    %v1643 = vpack.c.b16 %v1483, %v1475
    %v1644 = vpack.c.b16 %v1484, %v1476
    %v1645 = vpack.c.b16 %v1485, %v1477
    %v1646 = vpack.c.b16 %v1486, %v1478
    %v1647 = vpack.c.b16 %v1487, %v1479
    %v1648 = vpack.c.b16 %v1488, %v1480
    %v1649 = vpack.c.b16 %v1497, %v1489
    %v1650 = vpack.c.b16 %v1498, %v1490
    %v1651 = vpack.c.b16 %v1499, %v1491
    %v1652 = vpack.c.b16 %v1500, %v1492
    %v1653 = vpack.c.b16 %v1501, %v1493
    %v1654 = vpack.c.b16 %v1502, %v1494
    %v1655 = vpack.c.b16 %v1503, %v1495
    %v1656 = vpack.c.b16 %v1504, %v1496
    %v1657 = vpack.c.b16 %v1513, %v1505
    %v1658 = vpack.c.b16 %v1514, %v1506
    %v1659 = vpack.c.b16 %v1515, %v1507
    %v1660 = vpack.c.b16 %v1516, %v1508
    %v1661 = vpack.c.b16 %v1517, %v1509
    %v1662 = vpack.c.b16 %v1518, %v1510
    %v1663 = vpack.c.b16 %v1519, %v1511
    %v1664 = vpack.c.b16 %v1520, %v1512
    %v1665 = vpack.c.b16 %v1529, %v1521
    %v1666 = vpack.c.b16 %v1530, %v1522
    %v1667 = vpack.c.b16 %v1531, %v1523
    %v1668 = vpack.c.b16 %v1532, %v1524
    %v1669 = vpack.c.b16 %v1533, %v1525
    %v1670 = vpack.c.b16 %v1534, %v1526
    %v1671 = vpack.c.b16 %v1535, %v1527
    %v1672 = vpack.c.b16 %v1536, %v1528
    %v1673 = vpack.c.b16 %v1545, %v1537
    %v1674 = vpack.c.b16 %v1546, %v1538
    %v1675 = vpack.c.b16 %v1547, %v1539
    %v1676 = vpack.c.b16 %v1548, %v1540
    %v1677 = vpack.c.b16 %v1549, %v1541
    %v1678 = vpack.c.b16 %v1550, %v1542
    %v1679 = vpack.c.b16 %v1551, %v1543
    %v1680 = vpack.c.b16 %v1552, %v1544
    %1809 = vmatpush.bf16.msra.mxu0 %v1609
    %1810 = vmatpush.bf16.msra.mxu0 %v1601
    %1811 = vmatpush.bf16.msra.mxu0 %v1593
    %1812 = vmatpush.bf16.msra.mxu0 %v1585
    %1813 = vmatpush.bf16.msra.mxu0 %v1577
    %1814 = vmatpush.bf16.msra.mxu0 %v1569
    %1815 = vmatpush.bf16.msra.mxu0 %v1561
    %1816 = vmatpush.bf16.msra.mxu0 %v1553
    %1817 = vmatmul.bf16.gmra.mxu0 %v1039
    %v1818 = vpop.f32.mrf.mxu0
    %v1819 = vadd.f32 0.0, %v1818
    %v1820 = vpop.f32.mrf.mxu0
    %1821 = vdwg.mxu0
    %1822 = vmatpush.bf16.msra.mxu0 %v1673
    %1823 = vmatpush.bf16.msra.mxu0 %v1665
    %1824 = vmatpush.bf16.msra.mxu0 %v1657
    %1825 = vmatpush.bf16.msra.mxu0 %v1649
    %1826 = vmatpush.bf16.msra.mxu0 %v1641
    %1827 = vmatpush.bf16.msra.mxu0 %v1633
    %1828 = vmatpush.bf16.msra.mxu0 %v1625
    %1829 = vmatpush.bf16.msra.mxu0 %v1617
    %1830 = vmatmul.bf16.gmra.mxu0 %v1040
    %v1831 = vpop.f32.mrf.mxu0
    %v1832 = vadd.f32 %v1819, %v1831
    %v1833 = vpop.f32.mrf.mxu0
    %1834 = vdwg.mxu0
    %1835 = vmatpush.bf16.msra.mxu0 %v1610
    %1836 = vmatpush.bf16.msra.mxu0 %v1602
    %1837 = vmatpush.bf16.msra.mxu0 %v1594
    %1838 = vmatpush.bf16.msra.mxu0 %v1586
    %1839 = vmatpush.bf16.msra.mxu0 %v1578
    %1840 = vmatpush.bf16.msra.mxu0 %v1570
    %1841 = vmatpush.bf16.msra.mxu0 %v1562
    %1842 = vmatpush.bf16.msra.mxu0 %v1554
    %1843 = vmatmul.bf16.gmra.mxu0 %v1039
    %v1844 = vpop.f32.mrf.mxu0
    %v1845 = vadd.f32 0.0, %v1844
    %v1846 = vpop.f32.mrf.mxu0
    %1847 = vdwg.mxu0
    %1848 = vmatpush.bf16.msra.mxu0 %v1674
    %1849 = vmatpush.bf16.msra.mxu0 %v1666
    %1850 = vmatpush.bf16.msra.mxu0 %v1658
    %1851 = vmatpush.bf16.msra.mxu0 %v1650
    %1852 = vmatpush.bf16.msra.mxu0 %v1642
    %1853 = vmatpush.bf16.msra.mxu0 %v1634
    %1854 = vmatpush.bf16.msra.mxu0 %v1626
    %1855 = vmatpush.bf16.msra.mxu0 %v1618
    %1856 = vmatmul.bf16.gmra.mxu0 %v1040
    %v1857 = vpop.f32.mrf.mxu0
    %v1858 = vadd.f32 %v1845, %v1857
    %v1859 = vpop.f32.mrf.mxu0
    %1860 = vdwg.mxu0
    %1861 = vmatpush.bf16.msra.mxu0 %v1611
    %1862 = vmatpush.bf16.msra.mxu0 %v1603
    %1863 = vmatpush.bf16.msra.mxu0 %v1595
    %1864 = vmatpush.bf16.msra.mxu0 %v1587
    %1865 = vmatpush.bf16.msra.mxu0 %v1579
    %1866 = vmatpush.bf16.msra.mxu0 %v1571
    %1867 = vmatpush.bf16.msra.mxu0 %v1563
    %1868 = vmatpush.bf16.msra.mxu0 %v1555
    %1869 = vmatmul.bf16.gmra.mxu0 %v1039
    %v1870 = vpop.f32.mrf.mxu0
    %v1871 = vadd.f32 0.0, %v1870
    %v1872 = vpop.f32.mrf.mxu0
    %1873 = vdwg.mxu0
    %1874 = vmatpush.bf16.msra.mxu0 %v1675
    %1875 = vmatpush.bf16.msra.mxu0 %v1667
    %1876 = vmatpush.bf16.msra.mxu0 %v1659
    %1877 = vmatpush.bf16.msra.mxu0 %v1651
    %1878 = vmatpush.bf16.msra.mxu0 %v1643
    %1879 = vmatpush.bf16.msra.mxu0 %v1635
    %1880 = vmatpush.bf16.msra.mxu0 %v1627
    %1881 = vmatpush.bf16.msra.mxu0 %v1619
    %1882 = vmatmul.bf16.gmra.mxu0 %v1040
    %v1883 = vpop.f32.mrf.mxu0
    %v1884 = vadd.f32 %v1871, %v1883
    %v1885 = vpop.f32.mrf.mxu0
    %1886 = vdwg.mxu0
    %1887 = vmatpush.bf16.msra.mxu0 %v1612
    %1888 = vmatpush.bf16.msra.mxu0 %v1604
    %1889 = vmatpush.bf16.msra.mxu0 %v1596
    %1890 = vmatpush.bf16.msra.mxu0 %v1588
    %1891 = vmatpush.bf16.msra.mxu0 %v1580
    %1892 = vmatpush.bf16.msra.mxu0 %v1572
    %1893 = vmatpush.bf16.msra.mxu0 %v1564
    %1894 = vmatpush.bf16.msra.mxu0 %v1556
    %1895 = vmatmul.bf16.gmra.mxu0 %v1039
    %v1896 = vpop.f32.mrf.mxu0
    %v1897 = vadd.f32 0.0, %v1896
    %v1898 = vpop.f32.mrf.mxu0
    %1899 = vdwg.mxu0
    %1900 = vmatpush.bf16.msra.mxu0 %v1676
    %1901 = vmatpush.bf16.msra.mxu0 %v1668
    %1902 = vmatpush.bf16.msra.mxu0 %v1660
    %1903 = vmatpush.bf16.msra.mxu0 %v1652
    %1904 = vmatpush.bf16.msra.mxu0 %v1644
    %1905 = vmatpush.bf16.msra.mxu0 %v1636
    %1906 = vmatpush.bf16.msra.mxu0 %v1628
    %1907 = vmatpush.bf16.msra.mxu0 %v1620
    %1908 = vmatmul.bf16.gmra.mxu0 %v1040
    %v1909 = vpop.f32.mrf.mxu0
    %v1910 = vadd.f32 %v1897, %v1909
    %v1911 = vpop.f32.mrf.mxu0
    %1912 = vdwg.mxu0
    %1913 = vmatpush.bf16.msra.mxu0 %v1613
    %1914 = vmatpush.bf16.msra.mxu0 %v1605
    %1915 = vmatpush.bf16.msra.mxu0 %v1597
    %1916 = vmatpush.bf16.msra.mxu0 %v1589
    %1917 = vmatpush.bf16.msra.mxu0 %v1581
    %1918 = vmatpush.bf16.msra.mxu0 %v1573
    %1919 = vmatpush.bf16.msra.mxu0 %v1565
    %1920 = vmatpush.bf16.msra.mxu0 %v1557
    %1921 = vmatmul.bf16.gmra.mxu0 %v1039
    %v1922 = vpop.f32.mrf.mxu0
    %v1923 = vadd.f32 0.0, %v1922
    %v1924 = vpop.f32.mrf.mxu0
    %1925 = vdwg.mxu0
    %1926 = vmatpush.bf16.msra.mxu0 %v1677
    %1927 = vmatpush.bf16.msra.mxu0 %v1669
    %1928 = vmatpush.bf16.msra.mxu0 %v1661
    %1929 = vmatpush.bf16.msra.mxu0 %v1653
    %1930 = vmatpush.bf16.msra.mxu0 %v1645
    %1931 = vmatpush.bf16.msra.mxu0 %v1637
    %1932 = vmatpush.bf16.msra.mxu0 %v1629
    %1933 = vmatpush.bf16.msra.mxu0 %v1621
    %1934 = vmatmul.bf16.gmra.mxu0 %v1040
    %v1935 = vpop.f32.mrf.mxu0
    %v1936 = vadd.f32 %v1923, %v1935
    %v1937 = vpop.f32.mrf.mxu0
    %1938 = vdwg.mxu0
    %1939 = vmatpush.bf16.msra.mxu0 %v1614
    %1940 = vmatpush.bf16.msra.mxu0 %v1606
    %1941 = vmatpush.bf16.msra.mxu0 %v1598
    %1942 = vmatpush.bf16.msra.mxu0 %v1590
    %1943 = vmatpush.bf16.msra.mxu0 %v1582
    %1944 = vmatpush.bf16.msra.mxu0 %v1574
    %1945 = vmatpush.bf16.msra.mxu0 %v1566
    %1946 = vmatpush.bf16.msra.mxu0 %v1558
    %1947 = vmatmul.bf16.gmra.mxu0 %v1039
    %v1948 = vpop.f32.mrf.mxu0
    %v1949 = vadd.f32 0.0, %v1948
    %v1950 = vpop.f32.mrf.mxu0
    %1951 = vdwg.mxu0
    %1952 = vmatpush.bf16.msra.mxu0 %v1678
    %1953 = vmatpush.bf16.msra.mxu0 %v1670
    %1954 = vmatpush.bf16.msra.mxu0 %v1662
    %1955 = vmatpush.bf16.msra.mxu0 %v1654
    %1956 = vmatpush.bf16.msra.mxu0 %v1646
    %1957 = vmatpush.bf16.msra.mxu0 %v1638
    %1958 = vmatpush.bf16.msra.mxu0 %v1630
    %1959 = vmatpush.bf16.msra.mxu0 %v1622
    %1960 = vmatmul.bf16.gmra.mxu0 %v1040
    %v1961 = vpop.f32.mrf.mxu0
    %v1962 = vadd.f32 %v1949, %v1961
    %v1963 = vpop.f32.mrf.mxu0
    %1964 = vdwg.mxu0
    %1965 = vmatpush.bf16.msra.mxu0 %v1615
    %1966 = vmatpush.bf16.msra.mxu0 %v1607
    %1967 = vmatpush.bf16.msra.mxu0 %v1599
    %1968 = vmatpush.bf16.msra.mxu0 %v1591
    %1969 = vmatpush.bf16.msra.mxu0 %v1583
    %1970 = vmatpush.bf16.msra.mxu0 %v1575
    %1971 = vmatpush.bf16.msra.mxu0 %v1567
    %1972 = vmatpush.bf16.msra.mxu0 %v1559
    %1973 = vmatmul.bf16.gmra.mxu0 %v1039
    %v1974 = vpop.f32.mrf.mxu0
    %v1975 = vadd.f32 0.0, %v1974
    %v1976 = vpop.f32.mrf.mxu0
    %1977 = vdwg.mxu0
    %1978 = vmatpush.bf16.msra.mxu0 %v1679
    %1979 = vmatpush.bf16.msra.mxu0 %v1671
    %1980 = vmatpush.bf16.msra.mxu0 %v1663
    %1981 = vmatpush.bf16.msra.mxu0 %v1655
    %1982 = vmatpush.bf16.msra.mxu0 %v1647
    %1983 = vmatpush.bf16.msra.mxu0 %v1639
    %1984 = vmatpush.bf16.msra.mxu0 %v1631
    %1985 = vmatpush.bf16.msra.mxu0 %v1623
    %1986 = vmatmul.bf16.gmra.mxu0 %v1040
    %v1987 = vpop.f32.mrf.mxu0
    %v1988 = vadd.f32 %v1975, %v1987
    %v1989 = vpop.f32.mrf.mxu0
    %1990 = vdwg.mxu0
    %1991 = vmatpush.bf16.msra.mxu0 %v1616
    %1992 = vmatpush.bf16.msra.mxu0 %v1608
    %1993 = vmatpush.bf16.msra.mxu0 %v1600
    %1994 = vmatpush.bf16.msra.mxu0 %v1592
    %1995 = vmatpush.bf16.msra.mxu0 %v1584
    %1996 = vmatpush.bf16.msra.mxu0 %v1576
    %1997 = vmatpush.bf16.msra.mxu0 %v1568
    %1998 = vmatpush.bf16.msra.mxu0 %v1560
    %1999 = vmatmul.bf16.gmra.mxu0 %v1039
    %v2000 = vpop.f32.mrf.mxu0
    %v2001 = vadd.f32 0.0, %v2000
    %v2002 = vpop.f32.mrf.mxu0
    %2003 = vdwg.mxu0
    %2004 = vmatpush.bf16.msra.mxu0 %v1680
    %2005 = vmatpush.bf16.msra.mxu0 %v1672
    %2006 = vmatpush.bf16.msra.mxu0 %v1664
    %2007 = vmatpush.bf16.msra.mxu0 %v1656
    %2008 = vmatpush.bf16.msra.mxu0 %v1648
    %2009 = vmatpush.bf16.msra.mxu0 %v1640
    %2010 = vmatpush.bf16.msra.mxu0 %v1632
    %2011 = vmatpush.bf16.msra.mxu0 %v1624
    %2012 = vmatmul.bf16.gmra.mxu0 %v1040
    %v2013 = vpop.f32.mrf.mxu0
    %v2014 = vadd.f32 %v2001, %v2013
    %v2015 = vpop.f32.mrf.mxu0
    %2016 = vdwg.mxu0
    %v2017 = vsub.f32 0.0, %v1832
    %v2018 = vsub.f32 0.0, %v1858
    %v2019 = vsub.f32 0.0, %v1884
    %v2020 = vsub.f32 0.0, %v1910
    %v2021 = vmul.f32 %v2017, 1.442695
    %v2022 = vpow.pop %v2021
    %v2023 = vmul.f32 %v2018, 1.442695
    %v2024 = vpow.pop %v2023
    %v2025 = vmul.f32 %v2019, 1.442695
    %v2026 = vpow.pop %v2025
    %v2027 = vmul.f32 %v2020, 1.442695
    %v2028 = vpow.pop %v2027
    %v2029 = vadd.f32 %v2022, 1.0
    %v2030 = vadd.f32 %v2024, 1.0
    %v2031 = vadd.f32 %v2026, 1.0
    %v2032 = vadd.f32 %v2028, 1.0
    %v2033 = vrcp.pop %v2029
    %v2034 = vrcp.pop %v2030
    %v2035 = vrcp.pop %v2031
    %v2036 = vrcp.pop %v2032
    %v2037 = vmul.f32 %v1832, %v2033
    %v2038 = vmul.f32 %v1858, %v2034
    %v2039 = vmul.f32 %v1884, %v2035
    %v2040 = vmul.f32 %v1910, %v2036
    %v2041 = vmul.f32 %v2037, %v1936
    %v2042 = vmul.f32 %v2038, %v1962
    %v2043 = vmul.f32 %v2039, %v1988
    %v2044 = vmul.f32 %v2040, %v2014
    %v2045 = vpack.c.bf16 %v2041, %v2041
    %v2046 = vpack.c.bf16 %v2042, %v2042
    %v2047 = vpack.c.bf16 %v2043, %v2043
    %v2048 = vpack.c.bf16 %v2044, %v2044
    %v2049 = vld [vmem:[#allocation8] sm:$0xff]
    %v2050 = vld [vmem:[#allocation8 + $0x8] sm:$0xff]
    %v2051 = vld [vmem:[#allocation8 + $0x10] sm:$0xff]
    %v2052 = vld [vmem:[#allocation8 + $0x18] sm:$0xff]
    %v2053 = vld [vmem:[#allocation8 + $0x20] sm:$0xff]
    %v2054 = vld [vmem:[#allocation8 + $0x28] sm:$0xff]
    %v2055 = vld [vmem:[#allocation8 + $0x30] sm:$0xff]
    %v2056 = vld [vmem:[#allocation8 + $0x38] sm:$0xff]
    %v2057 = vld [vmem:[#allocation8 + $0x40] sm:$0xff]
    %v2058 = vld [vmem:[#allocation8 + $0x48] sm:$0xff]
    %v2059 = vld [vmem:[#allocation8 + $0x50] sm:$0xff]
    %v2060 = vld [vmem:[#allocation8 + $0x58] sm:$0xff]
    %v2061 = vld [vmem:[#allocation8 + $0x60] sm:$0xff]
    %v2062 = vld [vmem:[#allocation8 + $0x68] sm:$0xff]
    %v2063 = vld [vmem:[#allocation8 + $0x70] sm:$0xff]
    %v2064 = vld [vmem:[#allocation8 + $0x78] sm:$0xff]
    %v2065 = vld [vmem:[#allocation8 + $0x80] sm:$0xff]
    %v2066 = vld [vmem:[#allocation8 + $0x88] sm:$0xff]
    %v2067 = vld [vmem:[#allocation8 + $0x90] sm:$0xff]
    %v2068 = vld [vmem:[#allocation8 + $0x98] sm:$0xff]
    %v2069 = vld [vmem:[#allocation8 + $0xa0] sm:$0xff]
    %v2070 = vld [vmem:[#allocation8 + $0xa8] sm:$0xff]
    %v2071 = vld [vmem:[#allocation8 + $0xb0] sm:$0xff]
    %v2072 = vld [vmem:[#allocation8 + $0xb8] sm:$0xff]
    %v2073 = vld [vmem:[#allocation8 + $0xc0] sm:$0xff]
    %v2074 = vld [vmem:[#allocation8 + $0xc8] sm:$0xff]
    %v2075 = vld [vmem:[#allocation8 + $0xd0] sm:$0xff]
    %v2076 = vld [vmem:[#allocation8 + $0xd8] sm:$0xff]
    %v2077 = vld [vmem:[#allocation8 + $0xe0] sm:$0xff]
    %v2078 = vld [vmem:[#allocation8 + $0xe8] sm:$0xff]
    %v2079 = vld [vmem:[#allocation8 + $0xf0] sm:$0xff]
    %v2080 = vld [vmem:[#allocation8 + $0xf8] sm:$0xff]
    %v2081 = vld [vmem:[#allocation8 + $0x100] sm:$0xff]
    %v2082 = vld [vmem:[#allocation8 + $0x108] sm:$0xff]
    %v2083 = vld [vmem:[#allocation8 + $0x110] sm:$0xff]
    %v2084 = vld [vmem:[#allocation8 + $0x118] sm:$0xff]
    %v2085 = vld [vmem:[#allocation8 + $0x120] sm:$0xff]
    %v2086 = vld [vmem:[#allocation8 + $0x128] sm:$0xff]
    %v2087 = vld [vmem:[#allocation8 + $0x130] sm:$0xff]
    %v2088 = vld [vmem:[#allocation8 + $0x138] sm:$0xff]
    %v2089 = vld [vmem:[#allocation8 + $0x140] sm:$0xff]
    %v2090 = vld [vmem:[#allocation8 + $0x148] sm:$0xff]
    %v2091 = vld [vmem:[#allocation8 + $0x150] sm:$0xff]
    %v2092 = vld [vmem:[#allocation8 + $0x158] sm:$0xff]
    %v2093 = vld [vmem:[#allocation8 + $0x160] sm:$0xff]
    %v2094 = vld [vmem:[#allocation8 + $0x168] sm:$0xff]
    %v2095 = vld [vmem:[#allocation8 + $0x170] sm:$0xff]
    %v2096 = vld [vmem:[#allocation8 + $0x178] sm:$0xff]
    %v2097 = vld [vmem:[#allocation8 + $0x180] sm:$0xff]
    %v2098 = vld [vmem:[#allocation8 + $0x188] sm:$0xff]
    %v2099 = vld [vmem:[#allocation8 + $0x190] sm:$0xff]
    %v2100 = vld [vmem:[#allocation8 + $0x198] sm:$0xff]
    %v2101 = vld [vmem:[#allocation8 + $0x1a0] sm:$0xff]
    %v2102 = vld [vmem:[#allocation8 + $0x1a8] sm:$0xff]
    %v2103 = vld [vmem:[#allocation8 + $0x1b0] sm:$0xff]
    %v2104 = vld [vmem:[#allocation8 + $0x1b8] sm:$0xff]
    %v2105 = vld [vmem:[#allocation8 + $0x1c0] sm:$0xff]
    %v2106 = vld [vmem:[#allocation8 + $0x1c8] sm:$0xff]
    %v2107 = vld [vmem:[#allocation8 + $0x1d0] sm:$0xff]
    %v2108 = vld [vmem:[#allocation8 + $0x1d8] sm:$0xff]
    %v2109 = vld [vmem:[#allocation8 + $0x1e0] sm:$0xff]
    %v2110 = vld [vmem:[#allocation8 + $0x1e8] sm:$0xff]
    %v2111 = vld [vmem:[#allocation8 + $0x1f0] sm:$0xff]
    %v2112 = vld [vmem:[#allocation8 + $0x1f8] sm:$0xff]
    %v2177 = vunpack.c.l.b16 %v2049
    %v2178 = vunpack.c.h.b16 %v2049
    %v2179 = vunpack.c.l.b16 %v2050
    %v2180 = vunpack.c.h.b16 %v2050
    %v2181 = vunpack.c.l.b16 %v2051
    %v2182 = vunpack.c.h.b16 %v2051
    %v2183 = vunpack.c.l.b16 %v2052
    %v2184 = vunpack.c.h.b16 %v2052
    %v2185 = vunpack.c.l.b16 %v2053
    %v2186 = vunpack.c.h.b16 %v2053
    %v2187 = vunpack.c.l.b16 %v2054
    %v2188 = vunpack.c.h.b16 %v2054
    %v2189 = vunpack.c.l.b16 %v2055
    %v2190 = vunpack.c.h.b16 %v2055
    %v2191 = vunpack.c.l.b16 %v2056
    %v2192 = vunpack.c.h.b16 %v2056
    %v2193 = vunpack.c.l.b16 %v2057
    %v2194 = vunpack.c.h.b16 %v2057
    %v2195 = vunpack.c.l.b16 %v2058
    %v2196 = vunpack.c.h.b16 %v2058
    %v2197 = vunpack.c.l.b16 %v2059
    %v2198 = vunpack.c.h.b16 %v2059
    %v2199 = vunpack.c.l.b16 %v2060
    %v2200 = vunpack.c.h.b16 %v2060
    %v2201 = vunpack.c.l.b16 %v2061
    %v2202 = vunpack.c.h.b16 %v2061
    %v2203 = vunpack.c.l.b16 %v2062
    %v2204 = vunpack.c.h.b16 %v2062
    %v2205 = vunpack.c.l.b16 %v2063
    %v2206 = vunpack.c.h.b16 %v2063
    %v2207 = vunpack.c.l.b16 %v2064
    %v2208 = vunpack.c.h.b16 %v2064
    %v2209 = vunpack.c.l.b16 %v2065
    %v2210 = vunpack.c.h.b16 %v2065
    %v2211 = vunpack.c.l.b16 %v2066
    %v2212 = vunpack.c.h.b16 %v2066
    %v2213 = vunpack.c.l.b16 %v2067
    %v2214 = vunpack.c.h.b16 %v2067
    %v2215 = vunpack.c.l.b16 %v2068
    %v2216 = vunpack.c.h.b16 %v2068
    %v2217 = vunpack.c.l.b16 %v2069
    %v2218 = vunpack.c.h.b16 %v2069
    %v2219 = vunpack.c.l.b16 %v2070
    %v2220 = vunpack.c.h.b16 %v2070
    %v2221 = vunpack.c.l.b16 %v2071
    %v2222 = vunpack.c.h.b16 %v2071
    %v2223 = vunpack.c.l.b16 %v2072
    %v2224 = vunpack.c.h.b16 %v2072
    %v2225 = vunpack.c.l.b16 %v2073
    %v2226 = vunpack.c.h.b16 %v2073
    %v2227 = vunpack.c.l.b16 %v2074
    %v2228 = vunpack.c.h.b16 %v2074
    %v2229 = vunpack.c.l.b16 %v2075
    %v2230 = vunpack.c.h.b16 %v2075
    %v2231 = vunpack.c.l.b16 %v2076
    %v2232 = vunpack.c.h.b16 %v2076
    %v2233 = vunpack.c.l.b16 %v2077
    %v2234 = vunpack.c.h.b16 %v2077
    %v2235 = vunpack.c.l.b16 %v2078
    %v2236 = vunpack.c.h.b16 %v2078
    %v2237 = vunpack.c.l.b16 %v2079
    %v2238 = vunpack.c.h.b16 %v2079
    %v2239 = vunpack.c.l.b16 %v2080
    %v2240 = vunpack.c.h.b16 %v2080
    %v2241 = vunpack.c.l.b16 %v2081
    %v2242 = vunpack.c.h.b16 %v2081
    %v2243 = vunpack.c.l.b16 %v2082
    %v2244 = vunpack.c.h.b16 %v2082
    %v2245 = vunpack.c.l.b16 %v2083
    %v2246 = vunpack.c.h.b16 %v2083
    %v2247 = vunpack.c.l.b16 %v2084
    %v2248 = vunpack.c.h.b16 %v2084
    %v2249 = vunpack.c.l.b16 %v2085
    %v2250 = vunpack.c.h.b16 %v2085
    %v2251 = vunpack.c.l.b16 %v2086
    %v2252 = vunpack.c.h.b16 %v2086
    %v2253 = vunpack.c.l.b16 %v2087
    %v2254 = vunpack.c.h.b16 %v2087
    %v2255 = vunpack.c.l.b16 %v2088
    %v2256 = vunpack.c.h.b16 %v2088
    %v2257 = vunpack.c.l.b16 %v2089
    %v2258 = vunpack.c.h.b16 %v2089
    %v2259 = vunpack.c.l.b16 %v2090
    %v2260 = vunpack.c.h.b16 %v2090
    %v2261 = vunpack.c.l.b16 %v2091
    %v2262 = vunpack.c.h.b16 %v2091
    %v2263 = vunpack.c.l.b16 %v2092
    %v2264 = vunpack.c.h.b16 %v2092
    %v2265 = vunpack.c.l.b16 %v2093
    %v2266 = vunpack.c.h.b16 %v2093
    %v2267 = vunpack.c.l.b16 %v2094
    %v2268 = vunpack.c.h.b16 %v2094
    %v2269 = vunpack.c.l.b16 %v2095
    %v2270 = vunpack.c.h.b16 %v2095
    %v2271 = vunpack.c.l.b16 %v2096
    %v2272 = vunpack.c.h.b16 %v2096
    %v2273 = vunpack.c.l.b16 %v2097
    %v2274 = vunpack.c.h.b16 %v2097
    %v2275 = vunpack.c.l.b16 %v2098
    %v2276 = vunpack.c.h.b16 %v2098
    %v2277 = vunpack.c.l.b16 %v2099
    %v2278 = vunpack.c.h.b16 %v2099
    %v2279 = vunpack.c.l.b16 %v2100
    %v2280 = vunpack.c.h.b16 %v2100
    %v2281 = vunpack.c.l.b16 %v2101
    %v2282 = vunpack.c.h.b16 %v2101
    %v2283 = vunpack.c.l.b16 %v2102
    %v2284 = vunpack.c.h.b16 %v2102
    %v2285 = vunpack.c.l.b16 %v2103
    %v2286 = vunpack.c.h.b16 %v2103
    %v2287 = vunpack.c.l.b16 %v2104
    %v2288 = vunpack.c.h.b16 %v2104
    %v2289 = vunpack.c.l.b16 %v2105
    %v2290 = vunpack.c.h.b16 %v2105
    %v2291 = vunpack.c.l.b16 %v2106
    %v2292 = vunpack.c.h.b16 %v2106
    %v2293 = vunpack.c.l.b16 %v2107
    %v2294 = vunpack.c.h.b16 %v2107
    %v2295 = vunpack.c.l.b16 %v2108
    %v2296 = vunpack.c.h.b16 %v2108
    %v2297 = vunpack.c.l.b16 %v2109
    %v2298 = vunpack.c.h.b16 %v2109
    %v2299 = vunpack.c.l.b16 %v2110
    %v2300 = vunpack.c.h.b16 %v2110
    %v2301 = vunpack.c.l.b16 %v2111
    %v2302 = vunpack.c.h.b16 %v2111
    %v2303 = vunpack.c.l.b16 %v2112
    %v2304 = vunpack.c.h.b16 %v2112
    %v2305 = vpack.c.b16 %v2179, %v2177
    %v2306 = vpack.c.b16 %v2180, %v2178
    %v2307 = vpack.c.b16 %v2183, %v2181
    %v2308 = vpack.c.b16 %v2184, %v2182
    %v2309 = vpack.c.b16 %v2187, %v2185
    %v2310 = vpack.c.b16 %v2188, %v2186
    %v2311 = vpack.c.b16 %v2191, %v2189
    %v2312 = vpack.c.b16 %v2192, %v2190
    %v2313 = vpack.c.b16 %v2195, %v2193
    %v2314 = vpack.c.b16 %v2196, %v2194
    %v2315 = vpack.c.b16 %v2199, %v2197
    %v2316 = vpack.c.b16 %v2200, %v2198
    %v2317 = vpack.c.b16 %v2203, %v2201
    %v2318 = vpack.c.b16 %v2204, %v2202
    %v2319 = vpack.c.b16 %v2207, %v2205
    %v2320 = vpack.c.b16 %v2208, %v2206
    %v2321 = vpack.c.b16 %v2211, %v2209
    %v2322 = vpack.c.b16 %v2212, %v2210
    %v2323 = vpack.c.b16 %v2215, %v2213
    %v2324 = vpack.c.b16 %v2216, %v2214
    %v2325 = vpack.c.b16 %v2219, %v2217
    %v2326 = vpack.c.b16 %v2220, %v2218
    %v2327 = vpack.c.b16 %v2223, %v2221
    %v2328 = vpack.c.b16 %v2224, %v2222
    %v2329 = vpack.c.b16 %v2227, %v2225
    %v2330 = vpack.c.b16 %v2228, %v2226
    %v2331 = vpack.c.b16 %v2231, %v2229
    %v2332 = vpack.c.b16 %v2232, %v2230
    %v2333 = vpack.c.b16 %v2235, %v2233
    %v2334 = vpack.c.b16 %v2236, %v2234
    %v2335 = vpack.c.b16 %v2239, %v2237
    %v2336 = vpack.c.b16 %v2240, %v2238
    %v2337 = vpack.c.b16 %v2243, %v2241
    %v2338 = vpack.c.b16 %v2244, %v2242
    %v2339 = vpack.c.b16 %v2247, %v2245
    %v2340 = vpack.c.b16 %v2248, %v2246
    %v2341 = vpack.c.b16 %v2251, %v2249
    %v2342 = vpack.c.b16 %v2252, %v2250
    %v2343 = vpack.c.b16 %v2255, %v2253
    %v2344 = vpack.c.b16 %v2256, %v2254
    %v2345 = vpack.c.b16 %v2259, %v2257
    %v2346 = vpack.c.b16 %v2260, %v2258
    %v2347 = vpack.c.b16 %v2263, %v2261
    %v2348 = vpack.c.b16 %v2264, %v2262
    %v2349 = vpack.c.b16 %v2267, %v2265
    %v2350 = vpack.c.b16 %v2268, %v2266
    %v2351 = vpack.c.b16 %v2271, %v2269
    %v2352 = vpack.c.b16 %v2272, %v2270
    %v2353 = vpack.c.b16 %v2275, %v2273
    %v2354 = vpack.c.b16 %v2276, %v2274
    %v2355 = vpack.c.b16 %v2279, %v2277
    %v2356 = vpack.c.b16 %v2280, %v2278
    %v2357 = vpack.c.b16 %v2283, %v2281
    %v2358 = vpack.c.b16 %v2284, %v2282
    %v2359 = vpack.c.b16 %v2287, %v2285
    %v2360 = vpack.c.b16 %v2288, %v2286
    %v2361 = vpack.c.b16 %v2291, %v2289
    %v2362 = vpack.c.b16 %v2292, %v2290
    %v2363 = vpack.c.b16 %v2295, %v2293
    %v2364 = vpack.c.b16 %v2296, %v2294
    %v2365 = vpack.c.b16 %v2299, %v2297
    %v2366 = vpack.c.b16 %v2300, %v2298
    %v2367 = vpack.c.b16 %v2303, %v2301
    %v2368 = vpack.c.b16 %v2304, %v2302
    %2433 = vmatpush.bf16.msra.mxu0 %v2319
    %2434 = vmatpush.bf16.msra.mxu0 %v2317
    %2435 = vmatpush.bf16.msra.mxu0 %v2315
    %2436 = vmatpush.bf16.msra.mxu0 %v2313
    %2437 = vmatpush.bf16.msra.mxu0 %v2311
    %2438 = vmatpush.bf16.msra.mxu0 %v2309
    %2439 = vmatpush.bf16.msra.mxu0 %v2307
    %2440 = vmatpush.bf16.msra.mxu0 %v2305
    %2441 = vmatmul.bf16.gmra.mxu0 %v2045
    %v2442 = vpop.f32.mrf.mxu0
    %v2443 = vadd.f32 0.0, %v2442
    %v2444 = vpop.f32.mrf.mxu0
    %2445 = vdwg.mxu0
    %2446 = vmatpush.bf16.msra.mxu0 %v2335
    %2447 = vmatpush.bf16.msra.mxu0 %v2333
    %2448 = vmatpush.bf16.msra.mxu0 %v2331
    %2449 = vmatpush.bf16.msra.mxu0 %v2329
    %2450 = vmatpush.bf16.msra.mxu0 %v2327
    %2451 = vmatpush.bf16.msra.mxu0 %v2325
    %2452 = vmatpush.bf16.msra.mxu0 %v2323
    %2453 = vmatpush.bf16.msra.mxu0 %v2321
    %2454 = vmatmul.bf16.gmra.mxu0 %v2046
    %v2455 = vpop.f32.mrf.mxu0
    %v2456 = vadd.f32 %v2443, %v2455
    %v2457 = vpop.f32.mrf.mxu0
    %2458 = vdwg.mxu0
    %2459 = vmatpush.bf16.msra.mxu0 %v2351
    %2460 = vmatpush.bf16.msra.mxu0 %v2349
    %2461 = vmatpush.bf16.msra.mxu0 %v2347
    %2462 = vmatpush.bf16.msra.mxu0 %v2345
    %2463 = vmatpush.bf16.msra.mxu0 %v2343
    %2464 = vmatpush.bf16.msra.mxu0 %v2341
    %2465 = vmatpush.bf16.msra.mxu0 %v2339
    %2466 = vmatpush.bf16.msra.mxu0 %v2337
    %2467 = vmatmul.bf16.gmra.mxu0 %v2047
    %v2468 = vpop.f32.mrf.mxu0
    %v2469 = vadd.f32 %v2456, %v2468
    %v2470 = vpop.f32.mrf.mxu0
    %2471 = vdwg.mxu0
    %2472 = vmatpush.bf16.msra.mxu0 %v2367
    %2473 = vmatpush.bf16.msra.mxu0 %v2365
    %2474 = vmatpush.bf16.msra.mxu0 %v2363
    %2475 = vmatpush.bf16.msra.mxu0 %v2361
    %2476 = vmatpush.bf16.msra.mxu0 %v2359
    %2477 = vmatpush.bf16.msra.mxu0 %v2357
    %2478 = vmatpush.bf16.msra.mxu0 %v2355
    %2479 = vmatpush.bf16.msra.mxu0 %v2353
    %2480 = vmatmul.bf16.gmra.mxu0 %v2048
    %v2481 = vpop.f32.mrf.mxu0
    %v2482 = vadd.f32 %v2469, %v2481
    %v2483 = vpop.f32.mrf.mxu0
    %2484 = vdwg.mxu0
    %2485 = vmatpush.bf16.msra.mxu0 %v2320
    %2486 = vmatpush.bf16.msra.mxu0 %v2318
    %2487 = vmatpush.bf16.msra.mxu0 %v2316
    %2488 = vmatpush.bf16.msra.mxu0 %v2314
    %2489 = vmatpush.bf16.msra.mxu0 %v2312
    %2490 = vmatpush.bf16.msra.mxu0 %v2310
    %2491 = vmatpush.bf16.msra.mxu0 %v2308
    %2492 = vmatpush.bf16.msra.mxu0 %v2306
    %2493 = vmatmul.bf16.gmra.mxu0 %v2045
    %v2494 = vpop.f32.mrf.mxu0
    %v2495 = vadd.f32 0.0, %v2494
    %v2496 = vpop.f32.mrf.mxu0
    %2497 = vdwg.mxu0
    %2498 = vmatpush.bf16.msra.mxu0 %v2336
    %2499 = vmatpush.bf16.msra.mxu0 %v2334
    %2500 = vmatpush.bf16.msra.mxu0 %v2332
    %2501 = vmatpush.bf16.msra.mxu0 %v2330
    %2502 = vmatpush.bf16.msra.mxu0 %v2328
    %2503 = vmatpush.bf16.msra.mxu0 %v2326
    %2504 = vmatpush.bf16.msra.mxu0 %v2324
    %2505 = vmatpush.bf16.msra.mxu0 %v2322
    %2506 = vmatmul.bf16.gmra.mxu0 %v2046
    %v2507 = vpop.f32.mrf.mxu0
    %v2508 = vadd.f32 %v2495, %v2507
    %v2509 = vpop.f32.mrf.mxu0
    %2510 = vdwg.mxu0
    %2511 = vmatpush.bf16.msra.mxu0 %v2352
    %2512 = vmatpush.bf16.msra.mxu0 %v2350
    %2513 = vmatpush.bf16.msra.mxu0 %v2348
    %2514 = vmatpush.bf16.msra.mxu0 %v2346
    %2515 = vmatpush.bf16.msra.mxu0 %v2344
    %2516 = vmatpush.bf16.msra.mxu0 %v2342
    %2517 = vmatpush.bf16.msra.mxu0 %v2340
    %2518 = vmatpush.bf16.msra.mxu0 %v2338
    %2519 = vmatmul.bf16.gmra.mxu0 %v2047
    %v2520 = vpop.f32.mrf.mxu0
    %v2521 = vadd.f32 %v2508, %v2520
    %v2522 = vpop.f32.mrf.mxu0
    %2523 = vdwg.mxu0
    %2524 = vmatpush.bf16.msra.mxu0 %v2368
    %2525 = vmatpush.bf16.msra.mxu0 %v2366
    %2526 = vmatpush.bf16.msra.mxu0 %v2364
    %2527 = vmatpush.bf16.msra.mxu0 %v2362
    %2528 = vmatpush.bf16.msra.mxu0 %v2360
    %2529 = vmatpush.bf16.msra.mxu0 %v2358
    %2530 = vmatpush.bf16.msra.mxu0 %v2356
    %2531 = vmatpush.bf16.msra.mxu0 %v2354
    %2532 = vmatmul.bf16.gmra.mxu0 %v2048
    %v2533 = vpop.f32.mrf.mxu0
    %v2534 = vadd.f32 %v2521, %v2533
    %v2535 = vpop.f32.mrf.mxu0
    %2536 = vdwg.mxu0
    %2537 = vst [vmem:[#allocation10] sm:$0xff] %v2482
    %2538 = vst [vmem:[#allocation10 + $0x8] sm:$0xff] %v2534
    // Predicated region
    $region54: #{_fused_forward.1} parent=1 // pred_check
      _
    $region55: #{_fused_forward.1} parent=1 // pred_check_branch
      %2540 = sbr.rel (0) target = $region57
    $region56: #{_fused_forward.1} parent=1 // pred_region
      %2542 = vsyncadd [#allocation4], 0
      %s2544 = sshll.u32 [#allocation10], 4
      %s2545 = int_to_ptr.vmem [resolvable:$true] %s2544
      %s2546 = sshll.u32 %s9, 4
      %s2547 = int_to_ptr.hbm [resolvable:$true] %s2546
      %2549 = dma.vmem_to_hbm [thread:$0]  %s2545, 256, %s2547, [#allocation4]
    $region57: #{_fused_forward.1} parent=1 // pred_fallthru
      _
    // Predicated region
    $region58: #{_fused_forward.1} parent=1 // pred_check
      _
    $region59: #{_fused_forward.1} parent=1 // pred_check_branch
      %2551 = sbr.rel (0) target = $region61
    $region60: #{_fused_forward.1} parent=1 // pred_region
      %2553 = vsyncadd [#allocation12], 0
      %s2555 = sshll.u32 [#allocation11], 4
      %s2556 = int_to_ptr.vmem [resolvable:$true] %s2555
      %s2557 = sshll.u32 %s10, 4
      %s2558 = int_to_ptr.hbm [resolvable:$true] %s2557
      %2560 = dma.vmem_to_hbm [thread:$0]  %s2556, 256, %s2558, [#allocation12]
    $region61: #{_fused_forward.1} parent=1 // pred_fallthru
      _
    // Predicated region
    $region62: #{_fused_forward.1} parent=1 // pred_check
      _
    $region63: #{_fused_forward.1} parent=1 // pred_check_branch
      %2562 = sbr.rel (0) target = $region65
    $region64: #{_fused_forward.1} parent=1 // pred_region
      %2564 = dma.done [#allocation4], 256
    $region65: #{_fused_forward.1} parent=1 // pred_fallthru
      _
    // Predicated region
    $region66: #{_fused_forward.1} parent=1 // pred_check
      _
    $region67: #{_fused_forward.1} parent=1 // pred_check_branch
      %2566 = sbr.rel (0) target = $region69
    $region68: #{_fused_forward.1} parent=1 // pred_region
      %2568 = dma.done [#allocation12], 256
    $region69: #{_fused_forward.1} parent=1 // pred_fallthru
      _
    %2569 = vsyncpa [#allocation3], 1
    %2570 = vsyncpa [#allocation6], 1
    %2571 = vsyncpa [#allocation9], 1
    %2572 = vsyncpa [#allocation4], 1
    %2573 = vsyncpa [#allocation12], 1

</llo_original>
